<compile_context>
chip_gen: v7x
topology: tpu7x:2x2x1
jax: 0.10.0
libtpu: 0.0.40
codegen_flags: <defaults>
</compile_context>

<pallas_src>
import functools

import numpy as np
import jax
import jax.numpy as jnp
from jax.experimental import pallas as pl
from jax.experimental.pallas import tpu as pltpu

_BN_EPS = 1e-5
_ROW_TILE_CAP = 2048   # hard cap on rows per grid step
_ROW_BASE = 16         # bf16 sublane-packing granularity


# ----------------------------- generation-aware budgets --------------------- #

@functools.lru_cache(maxsize=None)
def _vmem_budget_bytes():
    # ~half of physical VMEM, capped at 64 MiB (v7x: 64 MiB -> 32 MiB; v5e/v6e: 128 -> 64).
    try:
        cap = int(pltpu.get_tpu_info().vmem_capacity_bytes)
    except Exception:
        cap = 64 * 1024 * 1024
    return min(64 * 1024 * 1024, max(16 * 1024 * 1024, cap // 2))


@functools.lru_cache(maxsize=None)
def _compiler_params():
    # Single row-grid axis; "parallel" lets v7x's two TensorCores shard it.
    # TODO(synk): verify in the Mosaic dump that the row axis is actually split across the
    #             two v7x cores; if not, switch to pltpu.CORE_PARALLEL / explicit core axis.
    return pltpu.CompilerParams(
        dimension_semantics=("parallel",),
        vmem_limit_bytes=_vmem_budget_bytes(),
    )


# ----------------------------- Pallas kernels ------------------------------ #

def _face_kernel(xc_ref, coeff_ref, w3_ref, b_ref, wk_ref, o_ref):
    # Fused V2FConv3d + per-face half of F2VConv3d:
    #   y       = ReLU(xc @ W3 + b)   (3-corner depthwise + 1x1 conv + BN folded, K = 3*cin)
    #   contrib = (coeff @ wk) * y    (fuzzy SPH bin weighting, depthwise over channels)
    y = jnp.dot(xc_ref[...], w3_ref[...], preferred_element_type=jnp.float32)
    y = jnp.maximum(y + b_ref[...], 0.0)
    fw = jnp.dot(coeff_ref[...], wk_ref[...], preferred_element_type=jnp.float32)
    o_ref[...] = (fw * y).astype(o_ref.dtype)


def _vertex_kernel(agg_ref, inv_ref, w_ref, b_ref, o_ref):
    # Per-vertex half of F2VConv3d on the pre-summed facet contributions:
    #   out = ReLU((sum_f contrib) @ W * (1/nf) + b)      (mean commuted through the 1x1 conv)
    y = jnp.dot(agg_ref[...], w_ref[...], preferred_element_type=jnp.float32)
    o_ref[...] = jnp.maximum(y * inv_ref[...] + b_ref[...], 0.0).astype(o_ref.dtype)


def _vertex_concat_kernel(x_ref, agg_ref, inv_ref, w_ref, b_ref, o_ref, *, cin):
    # Same as _vertex_kernel, but also writes the dense-net concatenation [x, net] directly
    # (removes the XLA concatenate + per-iteration rewrite of x, widens the store lanes).
    y = jnp.dot(agg_ref[...], w_ref[...], preferred_element_type=jnp.float32)
    y = jnp.maximum(y * inv_ref[...] + b_ref[...], 0.0)
    o_ref[:, :cin] = x_ref[...]
    o_ref[:, cin:] = y.astype(o_ref.dtype)


def _linear_kernel(x_ref, w_ref, b_ref, o_ref):
    # PerItemConv3d: 1x1 conv + folded BN + ReLU.
    y = jnp.dot(x_ref[...], w_ref[...], preferred_element_type=jnp.float32)
    o_ref[...] = jnp.maximum(y + b_ref[...], 0.0).astype(o_ref.dtype)


# ----------------------------- Pallas wrappers ------------------------------ #

def _round_up(n, m):
    return ((n + m - 1) // m) * m


def _pick_tile(n_rows, bytes_per_row, cap=_ROW_TILE_CAP, base=_ROW_BASE):
    """Row tile (multiple of `base`) sized so the double-buffered working set stays well
    inside the scoped-VMEM budget, plus the padded row count."""
    budget = _vmem_budget_bytes() // 2                          # headroom for weights/temps
    by_budget = max(base, budget // max(1, 2 * bytes_per_row))  # x2: double buffering
    tr = min(cap, by_budget, _round_up(n_rows, base))
    tr = max(base, (tr // base) * base)
    return tr, _round_up(n_rows, tr)


def _pad_rows_to(x, rows):
    pad = rows - x.shape[0]
    if pad:
        x = jnp.pad(x, [(0, pad)] + [(0, 0)] * (x.ndim - 1))
    return x


def face_fused_apply(xc, coeff, w3, b, wk, tr):
    fp, cin3 = xc.shape
    k = coeff.shape[1]
    c4 = w3.shape[1]
    return pl.pallas_call(
        _face_kernel,
        out_shape=jax.ShapeDtypeStruct((fp, c4), jnp.bfloat16),
        grid=(fp // tr,),
        in_specs=[
            pl.BlockSpec((tr, cin3), lambda i: (i, 0)),
            pl.BlockSpec((tr, k), lambda i: (i, 0)),
            pl.BlockSpec((cin3, c4), lambda i: (0, 0)),
            pl.BlockSpec((1, c4), lambda i: (0, 0)),
            pl.BlockSpec((k, c4), lambda i: (0, 0)),
        ],
        out_specs=pl.BlockSpec((tr, c4), lambda i: (i, 0)),
        compiler_params=_compiler_params(),
    )(xc, coeff, w3, b, wk)


def f2v_vertex_apply(agg, invnf, w, b, tr):
    vp, c4 = agg.shape
    cout = w.shape[1]
    return pl.pallas_call(
        _vertex_kernel,
        out_shape=jax.ShapeDtypeStruct((vp, cout), jnp.bfloat16),
        grid=(vp // tr,),
        in_specs=[
            pl.BlockSpec((tr, c4), lambda i: (i, 0)),
            pl.BlockSpec((tr, 1), lambda i: (i, 0)),
            pl.BlockSpec((c4, cout), lambda i: (0, 0)),
            pl.BlockSpec((1, cout), lambda i: (0, 0)),
        ],
        out_specs=pl.BlockSpec((tr, cout), lambda i: (i, 0)),
        compiler_params=_compiler_params(),
    )(agg, invnf, w, b)


def f2v_vertex_concat_apply(x, agg, invnf, w, b, tr):
    vp, cin = x.shape
    c4 = agg.shape[1]
    cout = w.shape[1]
    width = cin + cout
    return pl.pallas_call(
        functools.partial(_vertex_concat_kernel, cin=cin),
        out_shape=jax.ShapeDtypeStruct((vp, width), jnp.bfloat16),
        grid=(vp // tr,),
        in_specs=[
            pl.BlockSpec((tr, cin), lambda i: (i, 0)),
            pl.BlockSpec((tr, c4), lambda i: (i, 0)),
            pl.BlockSpec((tr, 1), lambda i: (i, 0)),
            pl.BlockSpec((c4, cout), lambda i: (0, 0)),
            pl.BlockSpec((1, cout), lambda i: (0, 0)),
        ],
        out_specs=pl.BlockSpec((tr, width), lambda i: (i, 0)),
        compiler_params=_compiler_params(),
    )(x, agg, invnf, w, b)


def linear_bias_relu(x, w, b, tr):
    rows, cin = x.shape
    cout = w.shape[1]
    return pl.pallas_call(
        _linear_kernel,
        out_shape=jax.ShapeDtypeStruct((rows, cout), jnp.bfloat16),
        grid=(rows // tr,),
        in_specs=[
            pl.BlockSpec((tr, cin), lambda i: (i, 0)),
            pl.BlockSpec((cin, cout), lambda i: (0, 0)),
            pl.BlockSpec((1, cout), lambda i: (0, 0)),
        ],
        out_specs=pl.BlockSpec((tr, cout), lambda i: (i, 0)),
        compiler_params=_compiler_params(),
    )(x, w, b)


# ----------------------------- parameters (BN / depthwise folded) ----------- #

def _dense(key, fan_in, fan_out):
    return jax.random.normal(key, (fan_in, fan_out), jnp.float32) * (1.0 / np.sqrt(fan_in))


def _bn_affine(c):
    # Inference-mode BN (running mean=0, var=1, gamma=1, beta=0) as an affine transform.
    scale = jnp.full((c,), 1.0 / np.sqrt(1.0 + _BN_EPS), jnp.float32)
    bias = jnp.zeros((c,), jnp.float32)
    return scale, bias


def _v2f_params(key, cin, cout):
    k1, k2 = jax.random.split(key)
    dw = _dense(k1, 3, cin)           # depthwise weight over the 3 face corners
    w = _dense(k2, cin, cout)         # 1x1 conv
    scale, bias = _bn_affine(cout)
    # Fold depthwise + BN scale into a single (3*cin, cout) weight so the kernel runs ONE
    # MXU pass instead of three:
    #   ReLU((sum_c x_c*dw_c) @ W * s + b) == ReLU(concat_c(x_c) @ stack_c(dw_c[:,None]*(W*s)) + b)
    w3 = dw[:, :, None] * (w * scale[None, :])[None, :, :]     # (3, cin, cout)
    return dict(w3=w3.reshape(3 * cin, cout).astype(jnp.bfloat16), b=bias[None, :])


def _f2v_params(key, cin, cout, k_bins):
    k1, k2 = jax.random.split(key)
    wk = _dense(k1, k_bins, cin)      # SPH kernel-bin weights (depthwise over channels)
    w = _dense(k2, cin, cout)
    scale, bias = _bn_affine(cout)
    return dict(wk=wk.astype(jnp.bfloat16),
                w=(w * scale[None, :]).astype(jnp.bfloat16),
                b=bias[None, :])


def _transit_params(key, cin, cout):
    w = _dense(key, cin, cout)
    scale, bias = _bn_affine(cout)
    return dict(w=(w * scale[None, :]).astype(jnp.bfloat16), b=bias[None, :])


def init_encoder_mesh_block(key, in_channels, out_channels, growth_rate, spharm_L, max_iter=2):
    k_bins = spharm_L * spharm_L
    factor = 4
    mesh = []
    cin = in_channels
    keys = jax.random.split(key, 4 * max_iter + 1)
    ki = 0
    for _ in range(max_iter):
        c4 = factor * growth_rate
        # MeshConv1: V2VConv3d(cin, [4g, 4g])
        mesh.append(dict(v2f=_v2f_params(keys[ki], cin, c4),
                         f2v=_f2v_params(keys[ki + 1], c4, c4, k_bins)))
        # MeshConv2: V2VConv3d(4g, [4g, g])
        mesh.append(dict(v2f=_v2f_params(keys[ki + 2], c4, c4),
                         f2v=_f2v_params(keys[ki + 3], c4, growth_rate, k_bins)))
        ki += 4
        cin += growth_rate
    transit = _transit_params(keys[ki], cin, out_channels)
    return dict(mesh=mesh, transit=transit)


# ----------------------------- forward (glue + kernels) --------------------- #

def _v2f_contrib(p, x, face_p, coeff_p, tr_f):
    # Vertex -> facet.  ONE corner gather (XLA); everything downstream (merged 3-corner
    # depthwise + 1x1 conv + BN + ReLU + fuzzy SPH weighting) is fused into one Pallas call.
    fp = face_p.shape[0]
    cin = x.shape[1]
    xc = jnp.take(x, face_p.reshape(-1), axis=0).reshape(fp, 3 * cin)
    return face_fused_apply(xc, coeff_p, p['v2f']['w3'], p['v2f']['b'], p['f2v']['wk'], tr_f)


def _f2v_aggregate(contrib, vt_sent):
    # Facet -> vertex incidence gather + sum over the MAXK slots, expressed so XLA fuses the
    # gather into the reduction: only [Vp, C4] ever reaches HBM (no [Vp, MAXK, C4] round trip,
    # no explicit mask, no sentinel concatenate — invalid slots index a zero-coeff padded row).
    # TODO(synk): move this gather in-kernel (scalar-prefetched vt_map + vectorized dynamic
    #             row gather / row DMAs) once Mosaic guarantees lowering for that pattern.
    g = jnp.take(contrib, vt_sent, axis=0)
    return jnp.sum(g, axis=1, dtype=jnp.float32).astype(jnp.bfloat16)


def encoder_mesh_block_forward(params, inputs, vertex, face, full_nf_count,
                               full_vt_map, filt_coeff, nv_in, max_iter=2):
    # `vertex` and `nv_in` are accepted but unused, matching the PyTorch forward.
    del vertex, nv_in
    n_vert, in_ch = inputs.shape
    n_face = face.shape[0]
    maxk = full_vt_map.shape[1]
    k_bins = filt_coeff.shape[1]
    growth = params['mesh'][1]['f2v']['w'].shape[1]
    c4 = params['mesh'][0]['v2f']['w3'].shape[1]
    width_max = in_ch + max_iter * growth

    # Budget-aware row tiles: face rows and vertex rows cost different bytes/row.
    cin_max = max(c4, in_ch + (max_iter - 1) * growth)
    face_row_bytes = 2 * (3 * cin_max + k_bins + 2 * c4)           # xc + coeff + contrib (+slack)
    vert_row_bytes = 2 * (c4 + 2 * width_max) + 4 * (maxk + 1)     # agg + x + out + invnf/vt
    tr_f, fp = _pick_tile(n_face + 1, face_row_bytes)              # >=1 zero-coeff padded face row
    tr_v, vp = _pick_tile(n_vert, vert_row_bytes)

    # Pad mesh-topology operands once per forward (shared by every layer).
    face_p = _pad_rows_to(face, fp)
    coeff_p = _pad_rows_to(filt_coeff, fp).astype(jnp.bfloat16)    # padded rows exactly zero
    nf_p = _pad_rows_to(full_nf_count, vp)
    vt_p = _pad_rows_to(full_vt_map, vp)
    valid = jnp.arange(maxk, dtype=jnp.int32)[None, :] < nf_p[:, None]
    vt_sent = jnp.where(valid, vt_p, n_face).astype(jnp.int32)     # invalid -> zero-contrib row
    invnf = (1.0 / jnp.maximum(nf_p, 1).astype(jnp.float32))[:, None]
    # TODO(synk): normalization divides by the incident-face count; some Picasso F2VConv3d
    #             configs normalize by the sum of the fuzzy SPH coefficients instead.

    x = _pad_rows_to(inputs, vp).astype(jnp.bfloat16)
    for n in range(max_iter):
        p1, p2 = params['mesh'][2 * n], params['mesh'][2 * n + 1]
        # MeshConv1: V2VConv3d(width, [4g, 4g])
        agg1 = _f2v_aggregate(_v2f_contrib(p1, x, face_p, coeff_p, tr_f), vt_sent)
        net = f2v_vertex_apply(agg1, invnf, p1['f2v']['w'], p1['f2v']['b'], tr_v)
        # MeshConv2: V2VConv3d(4g, [4g, g]); the dense-net concat is fused into the kernel.
        agg2 = _f2v_aggregate(_v2f_contrib(p2, net, face_p, coeff_p, tr_f), vt_sent)
        x = f2v_vertex_concat_apply(x, agg2, invnf, p2['f2v']['w'], p2['f2v']['b'], tr_v)
    out = linear_bias_relu(x, params['transit']['w'], params['transit']['b'], tr_v)
    return out[:n_vert].astype(jnp.float32)


# ----------------------------------- main ----------------------------------- #

if __name__ == "__main__":
    # Small synthetic mesh / feature sizes.
    V, F, MAXK = 64, 96, 16
    in_channels, out_channels, growth_rate, spharm_L, max_iter = 8, 32, 8, 3, 2
    K = spharm_L * spharm_L

    key = jax.random.PRNGKey(0)
    k_face, k_x, k_coeff, k_vert, k_par = jax.random.split(key, 5)

    face = jax.random.randint(k_face, (F, 3), 0, V, dtype=jnp.int32)

    # Vertex -> incident-face map (deterministic, derived from `face` on the host).
    face_np = np.asarray(face)
    nf_count_np = np.zeros((V,), np.int32)
    vt_map_np = np.zeros((V, MAXK), np.int32)
    for f in range(F):
        for i in range(3):
            v = int(face_np[f, i])
            if nf_count_np[v] < MAXK:
                vt_map_np[v, nf_count_np[v]] = f
                nf_count_np[v] += 1
    full_nf_count = jnp.asarray(nf_count_np)
    full_vt_map = jnp.asarray(vt_map_np)

    inputs = jax.random.normal(k_x, (V, in_channels), jnp.float32)
    vertex = jax.random.normal(k_vert, (V, 3), jnp.float32)           # unused by forward
    filt_coeff = jax.nn.softmax(jax.random.normal(k_coeff, (F, K), jnp.float32), axis=-1)
    nv_in = jnp.array([V], jnp.int32)                                 # unused by forward

    params = init_encoder_mesh_block(k_par, in_channels, out_channels,
                                     growth_rate, spharm_L, max_iter)

    fwd = jax.jit(functools.partial(encoder_mesh_block_forward, max_iter=max_iter))
    out = fwd(params, inputs, vertex, face, full_nf_count, full_vt_map, filt_coeff, nv_in)
    out = jax.block_until_ready(out)
    assert out.shape == (V, out_channels), out.shape
    assert bool(jnp.all(jnp.isfinite(out)))
    print("KERNEL_OK")
</pallas_src>

<mosaic_0001>
module attributes {stable_mosaic.version = 11 : i64} {
  func.func @_face_kernel(%arg0: i32, %arg1: memref<112x24xbf16, #tpu.memory_space<vmem>>, %arg2: memref<112x9xbf16, #tpu.memory_space<vmem>>, %arg3: memref<24x32xbf16, #tpu.memory_space<vmem>>, %arg4: memref<1x32xf32, #tpu.memory_space<vmem>>, %arg5: memref<9x32xbf16, #tpu.memory_space<vmem>>, %arg6: memref<112x32xbf16, #tpu.memory_space<vmem>>) attributes {dimension_semantics = [#tpu.dimension_semantics<parallel>], iteration_bounds = array<i64: 1>, scalar_prefetch = 0 : i64, scratch_operands = 0 : i64, tpu.core_type = #tpu.core_type<tc>, window_params = [{transform_indices = @transform_0, window_bounds = array<i64: 112, 24>}, {transform_indices = @transform_1, window_bounds = array<i64: 112, 9>}, {pipeline_mode = #tpu.pipeline_mode<synchronous>, transform_indices = @transform_2, window_bounds = array<i64: 24, 32>}, {pipeline_mode = #tpu.pipeline_mode<synchronous>, transform_indices = @transform_3, window_bounds = array<i64: 1, 32>}, {pipeline_mode = #tpu.pipeline_mode<synchronous>, transform_indices = @transform_4, window_bounds = array<i64: 9, 32>}, {transform_indices = @transform_5, window_bounds = array<i64: 112, 32>}]} {
    %c0 = arith.constant 0 : index
    %c0_0 = arith.constant 0 : index
    %0 = vector.load %arg1[%c0, %c0_0] : memref<112x24xbf16, #tpu.memory_space<vmem>>, vector<112x24xbf16>
    %c0_1 = arith.constant 0 : index
    %c0_2 = arith.constant 0 : index
    %1 = vector.load %arg3[%c0_1, %c0_2] : memref<24x32xbf16, #tpu.memory_space<vmem>>, vector<24x32xbf16>
    %cst = arith.constant dense<0.000000e+00> : vector<112x32xf32>
    %2 = tpu.matmul %0, %1, %cst {dimension_numbers = #tpu.dot_dimension_numbers<[1], [0], [0], [1], [0, 0, 1, 1], [], []>} : vector<112x24xbf16>, vector<24x32xbf16>, vector<112x32xf32> -> vector<112x32xf32>
    %c0_3 = arith.constant 0 : index
    %c0_4 = arith.constant 0 : index
    %3 = vector.load %arg4[%c0_3, %c0_4] : memref<1x32xf32, #tpu.memory_space<vmem>>, vector<1x32xf32>
    %4 = vector.broadcast %3 : vector<1x32xf32> to vector<112x32xf32>
    %5 = arith.addf %2, %4 : vector<112x32xf32>
    %cst_5 = arith.constant 0.000000e+00 : f32
    %6 = vector.broadcast %cst_5 : f32 to vector<112x32xf32>
    %7 = arith.maximumf %5, %6 : vector<112x32xf32>
    %c0_6 = arith.constant 0 : index
    %c0_7 = arith.constant 0 : index
    %8 = vector.load %arg2[%c0_6, %c0_7] : memref<112x9xbf16, #tpu.memory_space<vmem>>, vector<112x9xbf16>
    %c0_8 = arith.constant 0 : index
    %c0_9 = arith.constant 0 : index
    %9 = vector.load %arg5[%c0_8, %c0_9] : memref<9x32xbf16, #tpu.memory_space<vmem>>, vector<9x32xbf16>
    %cst_10 = arith.constant dense<0.000000e+00> : vector<112x32xf32>
    %10 = tpu.matmul %8, %9, %cst_10 {dimension_numbers = #tpu.dot_dimension_numbers<[1], [0], [0], [1], [0, 0, 1, 1], [], []>} : vector<112x9xbf16>, vector<9x32xbf16>, vector<112x32xf32> -> vector<112x32xf32>
    %11 = arith.mulf %10, %7 : vector<112x32xf32>
    %12 = arith.truncf %11 : vector<112x32xf32> to vector<112x32xbf16>
    %c0_11 = arith.constant 0 : index
    %c0_12 = arith.constant 0 : index
    %13 = vector.load %arg6[%c0_11, %c0_12] : memref<112x32xbf16, #tpu.memory_space<vmem>>, vector<112x32xbf16>
    tpu.vector_store %arg6[%c0_11, %c0_12], %12 {strides = array<i32>} : memref<112x32xbf16, #tpu.memory_space<vmem>>, vector<112x32xbf16>,
    return
  }
  func.func @transform_0(%arg0: i32) -> (i32, i32) {
    %c0_i32 = arith.constant 0 : i32
    %c0_i32_0 = arith.constant 0 : i32
    return %arg0, %c0_i32 : i32, i32
  }
  func.func @transform_1(%arg0: i32) -> (i32, i32) {
    %c0_i32 = arith.constant 0 : i32
    %c0_i32_0 = arith.constant 0 : i32
    return %arg0, %c0_i32 : i32, i32
  }
  func.func @transform_2(%arg0: i32) -> (i32, i32) {
    %c0_i32 = arith.constant 0 : i32
    %c0_i32_0 = arith.constant 0 : i32
    %c0_i32_1 = arith.constant 0 : i32
    return %c0_i32, %c0_i32_0 : i32, i32
  }
  func.func @transform_3(%arg0: i32) -> (i32, i32) {
    %c0_i32 = arith.constant 0 : i32
    %c0_i32_0 = arith.constant 0 : i32
    %c0_i32_1 = arith.constant 0 : i32
    return %c0_i32, %c0_i32_0 : i32, i32
  }
  func.func @transform_4(%arg0: i32) -> (i32, i32) {
    %c0_i32 = arith.constant 0 : i32
    %c0_i32_0 = arith.constant 0 : i32
    %c0_i32_1 = arith.constant 0 : i32
    return %c0_i32, %c0_i32_0 : i32, i32
  }
  func.func @transform_5(%arg0: i32) -> (i32, i32) {
    %c0_i32 = arith.constant 0 : i32
    %c0_i32_0 = arith.constant 0 : i32
    return %arg0, %c0_i32 : i32, i32
  }
}

module attributes {stable_mosaic.version = 11 : i64} {
  func.func @_vertex_kernel(%arg0: i32, %arg1: memref<64x32xbf16, #tpu.memory_space<vmem>>, %arg2: memref<64x1xf32, #tpu.memory_space<vmem>>, %arg3: memref<32x32xbf16, #tpu.memory_space<vmem>>, %arg4: memref<1x32xf32, #tpu.memory_space<vmem>>, %arg5: memref<64x32xbf16, #tpu.memory_space<vmem>>) attributes {dimension_semantics = [#tpu.dimension_semantics<parallel>], iteration_bounds = array<i64: 1>, scalar_prefetch = 0 : i64, scratch_operands = 0 : i64, tpu.core_type = #tpu.core_type<tc>, window_params = [{transform_indices = @transform_0, window_bounds = array<i64: 64, 32>}, {transform_indices = @transform_1, window_bounds = array<i64: 64, 1>}, {pipeline_mode = #tpu.pipeline_mode<synchronous>, transform_indices = @transform_2, window_bounds = array<i64: 32, 32>}, {pipeline_mode = #tpu.pipeline_mode<synchronous>, transform_indices = @transform_3, window_bounds = array<i64: 1, 32>}, {transform_indices = @transform_4, window_bounds = array<i64: 64, 32>}]} {
    %c0 = arith.constant 0 : index
    %c0_0 = arith.constant 0 : index
    %0 = vector.load %arg1[%c0, %c0_0] : memref<64x32xbf16, #tpu.memory_space<vmem>>, vector<64x32xbf16>
    %c0_1 = arith.constant 0 : index
    %c0_2 = arith.constant 0 : index
    %1 = vector.load %arg3[%c0_1, %c0_2] : memref<32x32xbf16, #tpu.memory_space<vmem>>, vector<32x32xbf16>
    %cst = arith.constant dense<0.000000e+00> : vector<64x32xf32>
    %2 = tpu.matmul %0, %1, %cst {dimension_numbers = #tpu.dot_dimension_numbers<[1], [0], [0], [1], [0, 0, 1, 1], [], []>} : vector<64x32xbf16>, vector<32x32xbf16>, vector<64x32xf32> -> vector<64x32xf32>
    %c0_3 = arith.constant 0 : index
    %c0_4 = arith.constant 0 : index
    %3 = vector.load %arg2[%c0_3, %c0_4] : memref<64x1xf32, #tpu.memory_space<vmem>>, vector<64x1xf32>
    %4 = vector.broadcast %3 : vector<64x1xf32> to vector<64x32xf32>
    %5 = arith.mulf %2, %4 : vector<64x32xf32>
    %c0_5 = arith.constant 0 : index
    %c0_6 = arith.constant 0 : index
    %6 = vector.load %arg4[%c0_5, %c0_6] : memref<1x32xf32, #tpu.memory_space<vmem>>, vector<1x32xf32>
    %7 = vector.broadcast %6 : vector<1x32xf32> to vector<64x32xf32>
    %8 = arith.addf %5, %7 : vector<64x32xf32>
    %cst_7 = arith.constant 0.000000e+00 : f32
    %9 = vector.broadcast %cst_7 : f32 to vector<64x32xf32>
    %10 = arith.maximumf %8, %9 : vector<64x32xf32>
    %11 = arith.truncf %10 : vector<64x32xf32> to vector<64x32xbf16>
    %c0_8 = arith.constant 0 : index
    %c0_9 = arith.constant 0 : index
    %12 = vector.load %arg5[%c0_8, %c0_9] : memref<64x32xbf16, #tpu.memory_space<vmem>>, vector<64x32xbf16>
    tpu.vector_store %arg5[%c0_8, %c0_9], %11 {strides = array<i32>} : memref<64x32xbf16, #tpu.memory_space<vmem>>, vector<64x32xbf16>,
    return
  }
  func.func @transform_0(%arg0: i32) -> (i32, i32) {
    %c0_i32 = arith.constant 0 : i32
    %c0_i32_0 = arith.constant 0 : i32
    return %arg0, %c0_i32 : i32, i32
  }
  func.func @transform_1(%arg0: i32) -> (i32, i32) {
    %c0_i32 = arith.constant 0 : i32
    %c0_i32_0 = arith.constant 0 : i32
    return %arg0, %c0_i32 : i32, i32
  }
  func.func @transform_2(%arg0: i32) -> (i32, i32) {
    %c0_i32 = arith.constant 0 : i32
    %c0_i32_0 = arith.constant 0 : i32
    %c0_i32_1 = arith.constant 0 : i32
    return %c0_i32, %c0_i32_0 : i32, i32
  }
  func.func @transform_3(%arg0: i32) -> (i32, i32) {
    %c0_i32 = arith.constant 0 : i32
    %c0_i32_0 = arith.constant 0 : i32
    %c0_i32_1 = arith.constant 0 : i32
    return %c0_i32, %c0_i32_0 : i32, i32
  }
  func.func @transform_4(%arg0: i32) -> (i32, i32) {
    %c0_i32 = arith.constant 0 : i32
    %c0_i32_0 = arith.constant 0 : i32
    return %arg0, %c0_i32 : i32, i32
  }
}

module attributes {stable_mosaic.version = 11 : i64} {
  func.func @_face_kernel(%arg0: i32, %arg1: memref<112x96xbf16, #tpu.memory_space<vmem>>, %arg2: memref<112x9xbf16, #tpu.memory_space<vmem>>, %arg3: memref<96x32xbf16, #tpu.memory_space<vmem>>, %arg4: memref<1x32xf32, #tpu.memory_space<vmem>>, %arg5: memref<9x32xbf16, #tpu.memory_space<vmem>>, %arg6: memref<112x32xbf16, #tpu.memory_space<vmem>>) attributes {dimension_semantics = [#tpu.dimension_semantics<parallel>], iteration_bounds = array<i64: 1>, scalar_prefetch = 0 : i64, scratch_operands = 0 : i64, tpu.core_type = #tpu.core_type<tc>, window_params = [{transform_indices = @transform_0, window_bounds = array<i64: 112, 96>}, {transform_indices = @transform_1, window_bounds = array<i64: 112, 9>}, {pipeline_mode = #tpu.pipeline_mode<synchronous>, transform_indices = @transform_2, window_bounds = array<i64: 96, 32>}, {pipeline_mode = #tpu.pipeline_mode<synchronous>, transform_indices = @transform_3, window_bounds = array<i64: 1, 32>}, {pipeline_mode = #tpu.pipeline_mode<synchronous>, transform_indices = @transform_4, window_bounds = array<i64: 9, 32>}, {transform_indices = @transform_5, window_bounds = array<i64: 112, 32>}]} {
    %c0 = arith.constant 0 : index
    %c0_0 = arith.constant 0 : index
    %0 = vector.load %arg1[%c0, %c0_0] : memref<112x96xbf16, #tpu.memory_space<vmem>>, vector<112x96xbf16>
    %c0_1 = arith.constant 0 : index
    %c0_2 = arith.constant 0 : index
    %1 = vector.load %arg3[%c0_1, %c0_2] : memref<96x32xbf16, #tpu.memory_space<vmem>>, vector<96x32xbf16>
    %cst = arith.constant dense<0.000000e+00> : vector<112x32xf32>
    %2 = tpu.matmul %0, %1, %cst {dimension_numbers = #tpu.dot_dimension_numbers<[1], [0], [0], [1], [0, 0, 1, 1], [], []>} : vector<112x96xbf16>, vector<96x32xbf16>, vector<112x32xf32> -> vector<112x32xf32>
    %c0_3 = arith.constant 0 : index
    %c0_4 = arith.constant 0 : index
    %3 = vector.load %arg4[%c0_3, %c0_4] : memref<1x32xf32, #tpu.memory_space<vmem>>, vector<1x32xf32>
    %4 = vector.broadcast %3 : vector<1x32xf32> to vector<112x32xf32>
    %5 = arith.addf %2, %4 : vector<112x32xf32>
    %cst_5 = arith.constant 0.000000e+00 : f32
    %6 = vector.broadcast %cst_5 : f32 to vector<112x32xf32>
    %7 = arith.maximumf %5, %6 : vector<112x32xf32>
    %c0_6 = arith.constant 0 : index
    %c0_7 = arith.constant 0 : index
    %8 = vector.load %arg2[%c0_6, %c0_7] : memref<112x9xbf16, #tpu.memory_space<vmem>>, vector<112x9xbf16>
    %c0_8 = arith.constant 0 : index
    %c0_9 = arith.constant 0 : index
    %9 = vector.load %arg5[%c0_8, %c0_9] : memref<9x32xbf16, #tpu.memory_space<vmem>>, vector<9x32xbf16>
    %cst_10 = arith.constant dense<0.000000e+00> : vector<112x32xf32>
    %10 = tpu.matmul %8, %9, %cst_10 {dimension_numbers = #tpu.dot_dimension_numbers<[1], [0], [0], [1], [0, 0, 1, 1], [], []>} : vector<112x9xbf16>, vector<9x32xbf16>, vector<112x32xf32> -> vector<112x32xf32>
    %11 = arith.mulf %10, %7 : vector<112x32xf32>
    %12 = arith.truncf %11 : vector<112x32xf32> to vector<112x32xbf16>
    %c0_11 = arith.constant 0 : index
    %c0_12 = arith.constant 0 : index
    %13 = vector.load %arg6[%c0_11, %c0_12] : memref<112x32xbf16, #tpu.memory_space<vmem>>, vector<112x32xbf16>
    tpu.vector_store %arg6[%c0_11, %c0_12], %12 {strides = array<i32>} : memref<112x32xbf16, #tpu.memory_space<vmem>>, vector<112x32xbf16>,
    return
  }
  func.func @transform_0(%arg0: i32) -> (i32, i32) {
    %c0_i32 = arith.constant 0 : i32
    %c0_i32_0 = arith.constant 0 : i32
    return %arg0, %c0_i32 : i32, i32
  }
  func.func @transform_1(%arg0: i32) -> (i32, i32) {
    %c0_i32 = arith.constant 0 : i32
    %c0_i32_0 = arith.constant 0 : i32
    return %arg0, %c0_i32 : i32, i32
  }
  func.func @transform_2(%arg0: i32) -> (i32, i32) {
    %c0_i32 = arith.constant 0 : i32
    %c0_i32_0 = arith.constant 0 : i32
    %c0_i32_1 = arith.constant 0 : i32
    return %c0_i32, %c0_i32_0 : i32, i32
  }
  func.func @transform_3(%arg0: i32) -> (i32, i32) {
    %c0_i32 = arith.constant 0 : i32
    %c0_i32_0 = arith.constant 0 : i32
    %c0_i32_1 = arith.constant 0 : i32
    return %c0_i32, %c0_i32_0 : i32, i32
  }
  func.func @transform_4(%arg0: i32) -> (i32, i32) {
    %c0_i32 = arith.constant 0 : i32
    %c0_i32_0 = arith.constant 0 : i32
    %c0_i32_1 = arith.constant 0 : i32
    return %c0_i32, %c0_i32_0 : i32, i32
  }
  func.func @transform_5(%arg0: i32) -> (i32, i32) {
    %c0_i32 = arith.constant 0 : i32
    %c0_i32_0 = arith.constant 0 : i32
    return %arg0, %c0_i32 : i32, i32
  }
}

module attributes {stable_mosaic.version = 11 : i64} {
  func.func @_vertex_concat_kernel(%arg0: i32, %arg1: memref<64x8xbf16, #tpu.memory_space<vmem>>, %arg2: memref<64x32xbf16, #tpu.memory_space<vmem>>, %arg3: memref<64x1xf32, #tpu.memory_space<vmem>>, %arg4: memref<32x8xbf16, #tpu.memory_space<vmem>>, %arg5: memref<1x8xf32, #tpu.memory_space<vmem>>, %arg6: memref<64x16xbf16, #tpu.memory_space<vmem>>) attributes {dimension_semantics = [#tpu.dimension_semantics<parallel>], iteration_bounds = array<i64: 1>, scalar_prefetch = 0 : i64, scratch_operands = 0 : i64, tpu.core_type = #tpu.core_type<tc>, window_params = [{transform_indices = @transform_0, window_bounds = array<i64: 64, 8>}, {transform_indices = @transform_1, window_bounds = array<i64: 64, 32>}, {transform_indices = @transform_2, window_bounds = array<i64: 64, 1>}, {pipeline_mode = #tpu.pipeline_mode<synchronous>, transform_indices = @transform_3, window_bounds = array<i64: 32, 8>}, {pipeline_mode = #tpu.pipeline_mode<synchronous>, transform_indices = @transform_4, window_bounds = array<i64: 1, 8>}, {transform_indices = @transform_5, window_bounds = array<i64: 64, 16>}]} {
    %c0 = arith.constant 0 : index
    %c0_0 = arith.constant 0 : index
    %0 = vector.load %arg2[%c0, %c0_0] : memref<64x32xbf16, #tpu.memory_space<vmem>>, vector<64x32xbf16>
    %c0_1 = arith.constant 0 : index
    %c0_2 = arith.constant 0 : index
    %1 = vector.load %arg4[%c0_1, %c0_2] : memref<32x8xbf16, #tpu.memory_space<vmem>>, vector<32x8xbf16>
    %cst = arith.constant dense<0.000000e+00> : vector<64x8xf32>
    %2 = tpu.matmul %0, %1, %cst {dimension_numbers = #tpu.dot_dimension_numbers<[1], [0], [0], [1], [0, 0, 1, 1], [], []>} : vector<64x32xbf16>, vector<32x8xbf16>, vector<64x8xf32> -> vector<64x8xf32>
    %c0_3 = arith.constant 0 : index
    %c0_4 = arith.constant 0 : index
    %3 = vector.load %arg3[%c0_3, %c0_4] : memref<64x1xf32, #tpu.memory_space<vmem>>, vector<64x1xf32>
    %4 = vector.broadcast %3 : vector<64x1xf32> to vector<64x8xf32>
    %5 = arith.mulf %2, %4 : vector<64x8xf32>
    %c0_5 = arith.constant 0 : index
    %c0_6 = arith.constant 0 : index
    %6 = vector.load %arg5[%c0_5, %c0_6] : memref<1x8xf32, #tpu.memory_space<vmem>>, vector<1x8xf32>
    %7 = vector.broadcast %6 : vector<1x8xf32> to vector<64x8xf32>
    %8 = arith.addf %5, %7 : vector<64x8xf32>
    %cst_7 = arith.constant 0.000000e+00 : f32
    %9 = vector.broadcast %cst_7 : f32 to vector<64x8xf32>
    %10 = arith.maximumf %8, %9 : vector<64x8xf32>
    %c0_8 = arith.constant 0 : index
    %c0_9 = arith.constant 0 : index
    %11 = vector.load %arg1[%c0_8, %c0_9] : memref<64x8xbf16, #tpu.memory_space<vmem>>, vector<64x8xbf16>
    %c0_10 = arith.constant 0 : index
    %c0_11 = arith.constant 0 : index
    %12 = vector.load %arg6[%c0_10, %c0_11] : memref<64x16xbf16, #tpu.memory_space<vmem>>, vector<64x8xbf16>
    tpu.vector_store %arg6[%c0_10, %c0_11], %11 {strides = array<i32>} : memref<64x16xbf16, #tpu.memory_space<vmem>>, vector<64x8xbf16>,
    %13 = arith.truncf %10 : vector<64x8xf32> to vector<64x8xbf16>
    %c0_12 = arith.constant 0 : index
    %c8 = arith.constant 8 : index
    %14 = vector.load %arg6[%c0_12, %c8] : memref<64x16xbf16, #tpu.memory_space<vmem>>, vector<64x8xbf16>
    tpu.vector_store %arg6[%c0_12, %c8], %13 {strides = array<i32>} : memref<64x16xbf16, #tpu.memory_space<vmem>>, vector<64x8xbf16>,
    return
  }
  func.func @transform_0(%arg0: i32) -> (i32, i32) {
    %c0_i32 = arith.constant 0 : i32
    %c0_i32_0 = arith.constant 0 : i32
    return %arg0, %c0_i32 : i32, i32
  }
  func.func @transform_1(%arg0: i32) -> (i32, i32) {
    %c0_i32 = arith.constant 0 : i32
    %c0_i32_0 = arith.constant 0 : i32
    return %arg0, %c0_i32 : i32, i32
  }
  func.func @transform_2(%arg0: i32) -> (i32, i32) {
    %c0_i32 = arith.constant 0 : i32
    %c0_i32_0 = arith.constant 0 : i32
    return %arg0, %c0_i32 : i32, i32
  }
  func.func @transform_3(%arg0: i32) -> (i32, i32) {
    %c0_i32 = arith.constant 0 : i32
    %c0_i32_0 = arith.constant 0 : i32
    %c0_i32_1 = arith.constant 0 : i32
    return %c0_i32, %c0_i32_0 : i32, i32
  }
  func.func @transform_4(%arg0: i32) -> (i32, i32) {
    %c0_i32 = arith.constant 0 : i32
    %c0_i32_0 = arith.constant 0 : i32
    %c0_i32_1 = arith.constant 0 : i32
    return %c0_i32, %c0_i32_0 : i32, i32
  }
  func.func @transform_5(%arg0: i32) -> (i32, i32) {
    %c0_i32 = arith.constant 0 : i32
    %c0_i32_0 = arith.constant 0 : i32
    return %arg0, %c0_i32 : i32, i32
  }
}

module attributes {stable_mosaic.version = 11 : i64} {
  func.func @_face_kernel(%arg0: i32, %arg1: memref<112x48xbf16, #tpu.memory_space<vmem>>, %arg2: memref<112x9xbf16, #tpu.memory_space<vmem>>, %arg3: memref<48x32xbf16, #tpu.memory_space<vmem>>, %arg4: memref<1x32xf32, #tpu.memory_space<vmem>>, %arg5: memref<9x32xbf16, #tpu.memory_space<vmem>>, %arg6: memref<112x32xbf16, #tpu.memory_space<vmem>>) attributes {dimension_semantics = [#tpu.dimension_semantics<parallel>], iteration_bounds = array<i64: 1>, scalar_prefetch = 0 : i64, scratch_operands = 0 : i64, tpu.core_type = #tpu.core_type<tc>, window_params = [{transform_indices = @transform_0, window_bounds = array<i64: 112, 48>}, {transform_indices = @transform_1, window_bounds = array<i64: 112, 9>}, {pipeline_mode = #tpu.pipeline_mode<synchronous>, transform_indices = @transform_2, window_bounds = array<i64: 48, 32>}, {pipeline_mode = #tpu.pipeline_mode<synchronous>, transform_indices = @transform_3, window_bounds = array<i64: 1, 32>}, {pipeline_mode = #tpu.pipeline_mode<synchronous>, transform_indices = @transform_4, window_bounds = array<i64: 9, 32>}, {transform_indices = @transform_5, window_bounds = array<i64: 112, 32>}]} {
    %c0 = arith.constant 0 : index
    %c0_0 = arith.constant 0 : index
    %0 = vector.load %arg1[%c0, %c0_0] : memref<112x48xbf16, #tpu.memory_space<vmem>>, vector<112x48xbf16>
    %c0_1 = arith.constant 0 : index
    %c0_2 = arith.constant 0 : index
    %1 = vector.load %arg3[%c0_1, %c0_2] : memref<48x32xbf16, #tpu.memory_space<vmem>>, vector<48x32xbf16>
    %cst = arith.constant dense<0.000000e+00> : vector<112x32xf32>
    %2 = tpu.matmul %0, %1, %cst {dimension_numbers = #tpu.dot_dimension_numbers<[1], [0], [0], [1], [0, 0, 1, 1], [], []>} : vector<112x48xbf16>, vector<48x32xbf16>, vector<112x32xf32> -> vector<112x32xf32>
    %c0_3 = arith.constant 0 : index
    %c0_4 = arith.constant 0 : index
    %3 = vector.load %arg4[%c0_3, %c0_4] : memref<1x32xf32, #tpu.memory_space<vmem>>, vector<1x32xf32>
    %4 = vector.broadcast %3 : vector<1x32xf32> to vector<112x32xf32>
    %5 = arith.addf %2, %4 : vector<112x32xf32>
    %cst_5 = arith.constant 0.000000e+00 : f32
    %6 = vector.broadcast %cst_5 : f32 to vector<112x32xf32>
    %7 = arith.maximumf %5, %6 : vector<112x32xf32>
    %c0_6 = arith.constant 0 : index
    %c0_7 = arith.constant 0 : index
    %8 = vector.load %arg2[%c0_6, %c0_7] : memref<112x9xbf16, #tpu.memory_space<vmem>>, vector<112x9xbf16>
    %c0_8 = arith.constant 0 : index
    %c0_9 = arith.constant 0 : index
    %9 = vector.load %arg5[%c0_8, %c0_9] : memref<9x32xbf16, #tpu.memory_space<vmem>>, vector<9x32xbf16>
    %cst_10 = arith.constant dense<0.000000e+00> : vector<112x32xf32>
    %10 = tpu.matmul %8, %9, %cst_10 {dimension_numbers = #tpu.dot_dimension_numbers<[1], [0], [0], [1], [0, 0, 1, 1], [], []>} : vector<112x9xbf16>, vector<9x32xbf16>, vector<112x32xf32> -> vector<112x32xf32>
    %11 = arith.mulf %10, %7 : vector<112x32xf32>
    %12 = arith.truncf %11 : vector<112x32xf32> to vector<112x32xbf16>
    %c0_11 = arith.constant 0 : index
    %c0_12 = arith.constant 0 : index
    %13 = vector.load %arg6[%c0_11, %c0_12] : memref<112x32xbf16, #tpu.memory_space<vmem>>, vector<112x32xbf16>
    tpu.vector_store %arg6[%c0_11, %c0_12], %12 {strides = array<i32>} : memref<112x32xbf16, #tpu.memory_space<vmem>>, vector<112x32xbf16>,
    return
  }
  func.func @transform_0(%arg0: i32) -> (i32, i32) {
    %c0_i32 = arith.constant 0 : i32
    %c0_i32_0 = arith.constant 0 : i32
    return %arg0, %c0_i32 : i32, i32
  }
  func.func @transform_1(%arg0: i32) -> (i32, i32) {
    %c0_i32 = arith.constant 0 : i32
    %c0_i32_0 = arith.constant 0 : i32
    return %arg0, %c0_i32 : i32, i32
  }
  func.func @transform_2(%arg0: i32) -> (i32, i32) {
    %c0_i32 = arith.constant 0 : i32
    %c0_i32_0 = arith.constant 0 : i32
    %c0_i32_1 = arith.constant 0 : i32
    return %c0_i32, %c0_i32_0 : i32, i32
  }
  func.func @transform_3(%arg0: i32) -> (i32, i32) {
    %c0_i32 = arith.constant 0 : i32
    %c0_i32_0 = arith.constant 0 : i32
    %c0_i32_1 = arith.constant 0 : i32
    return %c0_i32, %c0_i32_0 : i32, i32
  }
  func.func @transform_4(%arg0: i32) -> (i32, i32) {
    %c0_i32 = arith.constant 0 : i32
    %c0_i32_0 = arith.constant 0 : i32
    %c0_i32_1 = arith.constant 0 : i32
    return %c0_i32, %c0_i32_0 : i32, i32
  }
  func.func @transform_5(%arg0: i32) -> (i32, i32) {
    %c0_i32 = arith.constant 0 : i32
    %c0_i32_0 = arith.constant 0 : i32
    return %arg0, %c0_i32 : i32, i32
  }
}

module attributes {stable_mosaic.version = 11 : i64} {
  func.func @_linear_kernel(%arg0: i32, %arg1: memref<64x24xbf16, #tpu.memory_space<vmem>>, %arg2: memref<24x32xbf16, #tpu.memory_space<vmem>>, %arg3: memref<1x32xf32, #tpu.memory_space<vmem>>, %arg4: memref<64x32xbf16, #tpu.memory_space<vmem>>) attributes {dimension_semantics = [#tpu.dimension_semantics<parallel>], iteration_bounds = array<i64: 1>, scalar_prefetch = 0 : i64, scratch_operands = 0 : i64, tpu.core_type = #tpu.core_type<tc>, window_params = [{transform_indices = @transform_0, window_bounds = array<i64: 64, 24>}, {pipeline_mode = #tpu.pipeline_mode<synchronous>, transform_indices = @transform_1, window_bounds = array<i64: 24, 32>}, {pipeline_mode = #tpu.pipeline_mode<synchronous>, transform_indices = @transform_2, window_bounds = array<i64: 1, 32>}, {transform_indices = @transform_3, window_bounds = array<i64: 64, 32>}]} {
    %c0 = arith.constant 0 : index
    %c0_0 = arith.constant 0 : index
    %0 = vector.load %arg1[%c0, %c0_0] : memref<64x24xbf16, #tpu.memory_space<vmem>>, vector<64x24xbf16>
    %c0_1 = arith.constant 0 : index
    %c0_2 = arith.constant 0 : index
    %1 = vector.load %arg2[%c0_1, %c0_2] : memref<24x32xbf16, #tpu.memory_space<vmem>>, vector<24x32xbf16>
    %cst = arith.constant dense<0.000000e+00> : vector<64x32xf32>
    %2 = tpu.matmul %0, %1, %cst {dimension_numbers = #tpu.dot_dimension_numbers<[1], [0], [0], [1], [0, 0, 1, 1], [], []>} : vector<64x24xbf16>, vector<24x32xbf16>, vector<64x32xf32> -> vector<64x32xf32>
    %c0_3 = arith.constant 0 : index
    %c0_4 = arith.constant 0 : index
    %3 = vector.load %arg3[%c0_3, %c0_4] : memref<1x32xf32, #tpu.memory_space<vmem>>, vector<1x32xf32>
    %4 = vector.broadcast %3 : vector<1x32xf32> to vector<64x32xf32>
    %5 = arith.addf %2, %4 : vector<64x32xf32>
    %cst_5 = arith.constant 0.000000e+00 : f32
    %6 = vector.broadcast %cst_5 : f32 to vector<64x32xf32>
    %7 = arith.maximumf %5, %6 : vector<64x32xf32>
    %8 = arith.truncf %7 : vector<64x32xf32> to vector<64x32xbf16>
    %c0_6 = arith.constant 0 : index
    %c0_7 = arith.constant 0 : index
    %9 = vector.load %arg4[%c0_6, %c0_7] : memref<64x32xbf16, #tpu.memory_space<vmem>>, vector<64x32xbf16>
    tpu.vector_store %arg4[%c0_6, %c0_7], %8 {strides = array<i32>} : memref<64x32xbf16, #tpu.memory_space<vmem>>, vector<64x32xbf16>,
    return
  }
  func.func @transform_0(%arg0: i32) -> (i32, i32) {
    %c0_i32 = arith.constant 0 : i32
    %c0_i32_0 = arith.constant 0 : i32
    return %arg0, %c0_i32 : i32, i32
  }
  func.func @transform_1(%arg0: i32) -> (i32, i32) {
    %c0_i32 = arith.constant 0 : i32
    %c0_i32_0 = arith.constant 0 : i32
    %c0_i32_1 = arith.constant 0 : i32
    return %c0_i32, %c0_i32_0 : i32, i32
  }
  func.func @transform_2(%arg0: i32) -> (i32, i32) {
    %c0_i32 = arith.constant 0 : i32
    %c0_i32_0 = arith.constant 0 : i32
    %c0_i32_1 = arith.constant 0 : i32
    return %c0_i32, %c0_i32_0 : i32, i32
  }
  func.func @transform_3(%arg0: i32) -> (i32, i32) {
    %c0_i32 = arith.constant 0 : i32
    %c0_i32_0 = arith.constant 0 : i32
    return %arg0, %c0_i32 : i32, i32
  }
}

module attributes {stable_mosaic.version = 11 : i64} {
  func.func @_vertex_concat_kernel(%arg0: i32, %arg1: memref<64x16xbf16, #tpu.memory_space<vmem>>, %arg2: memref<64x32xbf16, #tpu.memory_space<vmem>>, %arg3: memref<64x1xf32, #tpu.memory_space<vmem>>, %arg4: memref<32x8xbf16, #tpu.memory_space<vmem>>, %arg5: memref<1x8xf32, #tpu.memory_space<vmem>>, %arg6: memref<64x24xbf16, #tpu.memory_space<vmem>>) attributes {dimension_semantics = [#tpu.dimension_semantics<parallel>], iteration_bounds = array<i64: 1>, scalar_prefetch = 0 : i64, scratch_operands = 0 : i64, tpu.core_type = #tpu.core_type<tc>, window_params = [{transform_indices = @transform_0, window_bounds = array<i64: 64, 16>}, {transform_indices = @transform_1, window_bounds = array<i64: 64, 32>}, {transform_indices = @transform_2, window_bounds = array<i64: 64, 1>}, {pipeline_mode = #tpu.pipeline_mode<synchronous>, transform_indices = @transform_3, window_bounds = array<i64: 32, 8>}, {pipeline_mode = #tpu.pipeline_mode<synchronous>, transform_indices = @transform_4, window_bounds = array<i64: 1, 8>}, {transform_indices = @transform_5, window_bounds = array<i64: 64, 24>}]} {
    %c0 = arith.constant 0 : index
    %c0_0 = arith.constant 0 : index
    %0 = vector.load %arg2[%c0, %c0_0] : memref<64x32xbf16, #tpu.memory_space<vmem>>, vector<64x32xbf16>
    %c0_1 = arith.constant 0 : index
    %c0_2 = arith.constant 0 : index
    %1 = vector.load %arg4[%c0_1, %c0_2] : memref<32x8xbf16, #tpu.memory_space<vmem>>, vector<32x8xbf16>
    %cst = arith.constant dense<0.000000e+00> : vector<64x8xf32>
    %2 = tpu.matmul %0, %1, %cst {dimension_numbers = #tpu.dot_dimension_numbers<[1], [0], [0], [1], [0, 0, 1, 1], [], []>} : vector<64x32xbf16>, vector<32x8xbf16>, vector<64x8xf32> -> vector<64x8xf32>
    %c0_3 = arith.constant 0 : index
    %c0_4 = arith.constant 0 : index
    %3 = vector.load %arg3[%c0_3, %c0_4] : memref<64x1xf32, #tpu.memory_space<vmem>>, vector<64x1xf32>
    %4 = vector.broadcast %3 : vector<64x1xf32> to vector<64x8xf32>
    %5 = arith.mulf %2, %4 : vector<64x8xf32>
    %c0_5 = arith.constant 0 : index
    %c0_6 = arith.constant 0 : index
    %6 = vector.load %arg5[%c0_5, %c0_6] : memref<1x8xf32, #tpu.memory_space<vmem>>, vector<1x8xf32>
    %7 = vector.broadcast %6 : vector<1x8xf32> to vector<64x8xf32>
    %8 = arith.addf %5, %7 : vector<64x8xf32>
    %cst_7 = arith.constant 0.000000e+00 : f32
    %9 = vector.broadcast %cst_7 : f32 to vector<64x8xf32>
    %10 = arith.maximumf %8, %9 : vector<64x8xf32>
    %c0_8 = arith.constant 0 : index
    %c0_9 = arith.constant 0 : index
    %11 = vector.load %arg1[%c0_8, %c0_9] : memref<64x16xbf16, #tpu.memory_space<vmem>>, vector<64x16xbf16>
    %c0_10 = arith.constant 0 : index
    %c0_11 = arith.constant 0 : index
    %12 = vector.load %arg6[%c0_10, %c0_11] : memref<64x24xbf16, #tpu.memory_space<vmem>>, vector<64x16xbf16>
    tpu.vector_store %arg6[%c0_10, %c0_11], %11 {strides = array<i32>} : memref<64x24xbf16, #tpu.memory_space<vmem>>, vector<64x16xbf16>,
    %13 = arith.truncf %10 : vector<64x8xf32> to vector<64x8xbf16>
    %c0_12 = arith.constant 0 : index
    %c16 = arith.constant 16 : index
    %14 = vector.load %arg6[%c0_12, %c16] : memref<64x24xbf16, #tpu.memory_space<vmem>>, vector<64x8xbf16>
    tpu.vector_store %arg6[%c0_12, %c16], %13 {strides = array<i32>} : memref<64x24xbf16, #tpu.memory_space<vmem>>, vector<64x8xbf16>,
    return
  }
  func.func @transform_0(%arg0: i32) -> (i32, i32) {
    %c0_i32 = arith.constant 0 : i32
    %c0_i32_0 = arith.constant 0 : i32
    return %arg0, %c0_i32 : i32, i32
  }
  func.func @transform_1(%arg0: i32) -> (i32, i32) {
    %c0_i32 = arith.constant 0 : i32
    %c0_i32_0 = arith.constant 0 : i32
    return %arg0, %c0_i32 : i32, i32
  }
  func.func @transform_2(%arg0: i32) -> (i32, i32) {
    %c0_i32 = arith.constant 0 : i32
    %c0_i32_0 = arith.constant 0 : i32
    return %arg0, %c0_i32 : i32, i32
  }
  func.func @transform_3(%arg0: i32) -> (i32, i32) {
    %c0_i32 = arith.constant 0 : i32
    %c0_i32_0 = arith.constant 0 : i32
    %c0_i32_1 = arith.constant 0 : i32
    return %c0_i32, %c0_i32_0 : i32, i32
  }
  func.func @transform_4(%arg0: i32) -> (i32, i32) {
    %c0_i32 = arith.constant 0 : i32
    %c0_i32_0 = arith.constant 0 : i32
    %c0_i32_1 = arith.constant 0 : i32
    return %c0_i32, %c0_i32_0 : i32, i32
  }
  func.func @transform_5(%arg0: i32) -> (i32, i32) {
    %c0_i32 = arith.constant 0 : i32
    %c0_i32_0 = arith.constant 0 : i32
    return %arg0, %c0_i32 : i32, i32
  }
}

</mosaic_0001>

<llo_original>
// kernel: encoder_mesh_block_forward.10
$region0: #{encoder_mesh_block_forward.10}
  #allocation0 [shape = 'u32[]', space=smem, size = 0x4, offset = 0x4, fixed_abs, tag = 'smem constant byte address 0x4 - core index']
  #allocation1 [shape = 'u32[144,128]{1,0:T(1,128)}', space=vmem, size = 0x12000, scoped, tag = 'internal scratch']
  %s0 = inlined_call_operand.vmem [shape: bf16[64,32], index: 0, kind: input, shape index: {}]
  %s1 = inlined_call_operand.vmem [shape: f32[64,1], index: 1, kind: input, shape index: {}]
  %s2 = inlined_call_operand.vmem [shape: bf16[32,32], index: 2, kind: input, shape index: {}]
  %s3 = inlined_call_operand.vmem [shape: f32[1,32], index: 3, kind: input, shape index: {}]
  %s4 = inlined_call_operand.vmem [shape: bf16[64,32], index: 4, kind: output, shape index: {}]
  %s5 = sld [smem:[#allocation0]]
  $region26: #{encoder_mesh_block_forward.10} parent=0
    _
  %s7 = ssub.s32 1, %s5
  %s8 = scalar_select 0, %s7, %s5
  // Predicated region
  $region2: #{encoder_mesh_block_forward.10} parent=0 // pred_check
    _
  $region3: #{encoder_mesh_block_forward.10} parent=0 // pred_check_branch
    %10 = sbr.rel (0) target = $region5
  $region4: #{encoder_mesh_block_forward.10} parent=0 // pred_region
    _
  $region5: #{encoder_mesh_block_forward.10} parent=0 // pred_fallthru
    _
  // Predicated region
  $region6: #{encoder_mesh_block_forward.10} parent=0 // pred_check
    _
  $region7: #{encoder_mesh_block_forward.10} parent=0 // pred_check_branch
    %12 = sbr.rel (0) target = $region9
  $region8: #{encoder_mesh_block_forward.10} parent=0 // pred_region
    _
  $region9: #{encoder_mesh_block_forward.10} parent=0 // pred_fallthru
    _
  // Predicated region
  $region10: #{encoder_mesh_block_forward.10} parent=0 // pred_check
    _
  $region11: #{encoder_mesh_block_forward.10} parent=0 // pred_check_branch
    %14 = sbr.rel (0) target = $region13
  $region12: #{encoder_mesh_block_forward.10} parent=0 // pred_region
    _
  $region13: #{encoder_mesh_block_forward.10} parent=0 // pred_fallthru
    _
  // Predicated region
  $region14: #{encoder_mesh_block_forward.10} parent=0 // pred_check
    _
  $region15: #{encoder_mesh_block_forward.10} parent=0 // pred_check_branch
    %16 = sbr.rel (0) target = $region17
  $region16: #{encoder_mesh_block_forward.10} parent=0 // pred_region
    _
  $region17: #{encoder_mesh_block_forward.10} parent=0 // pred_fallthru
    _
  %v18 = vld [vmem:[%s0] sm:$0xf]
  %v19 = vld [vmem:[%s0 + $0x4] sm:$0xf]
  %v20 = vld [vmem:[%s0 + $0x8] sm:$0xf]
  %v21 = vld [vmem:[%s0 + $0xc] sm:$0xf]
  %v22 = vld [vmem:[%s0 + $0x10] sm:$0xf]
  %v23 = vld [vmem:[%s0 + $0x14] sm:$0xf]
  %v24 = vld [vmem:[%s0 + $0x18] sm:$0xf]
  %v25 = vld [vmem:[%s0 + $0x1c] sm:$0xf]
  %v26 = vld [vmem:[%s2] sm:$0xf]
  %v27 = vld [vmem:[%s2 + $0x4] sm:$0xf]
  %v28 = vld [vmem:[%s2 + $0x8] sm:$0xf]
  %v29 = vld [vmem:[%s2 + $0xc] sm:$0xf]
  %v38 = vunpack.c.l.b16 %v18
  %v39 = vunpack.c.l.b16 %v19
  %v40 = vunpack.c.l.b16 %v20
  %v41 = vunpack.c.l.b16 %v21
  %v42 = vunpack.c.l.b16 %v22
  %v43 = vunpack.c.l.b16 %v23
  %v44 = vunpack.c.l.b16 %v24
  %v45 = vunpack.c.l.b16 %v25
  %v46 = vpack.c.b16 %v39, %v38
  %v47 = vpack.c.b16 %v41, %v40
  %v48 = vpack.c.b16 %v43, %v42
  %v49 = vpack.c.b16 %v45, %v44
  %v54 = vunpack.c.l.b16 %v26
  %v55 = vunpack.c.l.b16 %v27
  %v56 = vunpack.c.l.b16 %v28
  %v57 = vunpack.c.l.b16 %v29
  %v58 = vpack.c.b16 %v55, %v54
  %v59 = vpack.c.b16 %v57, %v56
  %vm62 = vcmask 261120
  %v64 = vsel %vm62, %v46, 0
  %v67 = vsel %vm62, %v47, 0
  %v70 = vsel %vm62, %v48, 0
  %v73 = vsel %vm62, %v49, 0
  %75 = vmatprep.subr.bf16.mxu0 0
  %76 = vmatpush1.bf16.msra.mxu0 %v58
  %77 = vmatprep.subr.bf16.mxu0 0
  %78 = vmatpush1.bf16.msra.mxu0 %v59
  %79 = vmatprep.subr.bf16.mxu0 0
  %80 = vmatpush1.bf16.msra.mxu0 0
  %81 = vmatprep.subr.bf16.mxu0 0
  %82 = vmatpush1.bf16.msra.mxu0 0
  %83 = vmatprep.subr.bf16.mxu0 0
  %84 = vmatpush1.bf16.msra.mxu0 0
  %85 = vmatprep.subr.bf16.mxu0 0
  %86 = vmatpush1.bf16.msra.mxu0 0
  %87 = vmatprep.subr.bf16.mxu0 0
  %88 = vmatpush1.bf16.msra.mxu0 0
  %89 = vmatprep.subr.bf16.mxu0 0
  %90 = vmatpush1.bf16.msra.mxu0 0
  %91 = vmatprep.subr.bf16.mxu0 0
  %92 = vmatpush1.bf16.msra.mxu0 0
  %93 = vmatprep.subr.bf16.mxu0 0
  %94 = vmatpush1.bf16.msra.mxu0 0
  %95 = vmatprep.subr.bf16.mxu0 0
  %96 = vmatpush1.bf16.msra.mxu0 0
  %97 = vmatprep.subr.bf16.mxu0 0
  %98 = vmatpush1.bf16.msra.mxu0 0
  %99 = vmatprep.subr.bf16.mxu0 0
  %100 = vmatpush1.bf16.msra.mxu0 0
  %101 = vmatprep.subr.bf16.mxu0 0
  %102 = vmatpush1.bf16.msra.mxu0 0
  %103 = vmatprep.subr.bf16.mxu0 0
  %104 = vmatpush1.bf16.msra.mxu0 0
  %105 = vmatprep.subr.bf16.mxu0 0
  %106 = vmatpush1.bf16.msra.mxu0 0
  %107 = vmatprep.mubr.bf16.mxu0 0
  %108 = vmatmul.mubr.bf16.gmra.mrb[0].mxu0 %v64
  %v109 = vpop.f32.mrb[0].mxu0
  %v110 = vadd.f32 0.0, %v109
  %v111 = vpop.f32.mrb[0].mxu0
  %v112 = vpop.f32.mrb[0].mxu0
  %v113 = vadd.f32 0.0, %v112
  %v114 = vpop.f32.mrb[0].mxu0
  %115 = vmatprep.mubr.bf16.mxu0 0
  %116 = vmatmul.mubr.bf16.gmra.mrb[0].mxu0 %v67
  %v117 = vpop.f32.mrb[0].mxu0
  %v118 = vadd.f32 0.0, %v117
  %v119 = vpop.f32.mrb[0].mxu0
  %v120 = vpop.f32.mrb[0].mxu0
  %v121 = vadd.f32 0.0, %v120
  %v122 = vpop.f32.mrb[0].mxu0
  %123 = vmatprep.mubr.bf16.mxu0 0
  %124 = vmatmul.mubr.bf16.gmra.mrb[0].mxu0 %v70
  %v125 = vpop.f32.mrb[0].mxu0
  %v126 = vadd.f32 0.0, %v125
  %v127 = vpop.f32.mrb[0].mxu0
  %v128 = vpop.f32.mrb[0].mxu0
  %v129 = vadd.f32 0.0, %v128
  %v130 = vpop.f32.mrb[0].mxu0
  %131 = vmatprep.mubr.bf16.mxu0 0
  %132 = vmatmul.mubr.bf16.gmra.mrb[0].mxu0 %v73
  %v133 = vpop.f32.mrb[0].mxu0
  %v134 = vadd.f32 0.0, %v133
  %v135 = vpop.f32.mrb[0].mxu0
  %v136 = vpop.f32.mrb[0].mxu0
  %v137 = vadd.f32 0.0, %v136
  %v138 = vpop.f32.mrb[0].mxu0
  %139 = vdwg.mxu0
  %v140 = vld [vmem:[%s1] sm:$0xff]
  %v141 = vld [vmem:[%s1 + $0x8] sm:$0xff]
  %v142 = vld [vmem:[%s1 + $0x10] sm:$0xff]
  %v143 = vld [vmem:[%s1 + $0x18] sm:$0xff]
  %v144 = vld [vmem:[%s1 + $0x20] sm:$0xff]
  %v145 = vld [vmem:[%s1 + $0x28] sm:$0xff]
  %v146 = vld [vmem:[%s1 + $0x30] sm:$0xff]
  %v147 = vld [vmem:[%s1 + $0x38] sm:$0xff]
  %149 = vset.pattern.permute.xlu0 0
  %150 = vperm.xlu0 %149, %v140
  %v151 = vpop.permute.xlu0 %150
  %154 = vset.pattern.permute.xlu0 0
  %155 = vperm.xlu0 %154, %v141
  %v156 = vpop.permute.xlu0 %155
  %159 = vset.pattern.permute.xlu0 0
  %160 = vperm.xlu0 %159, %v142
  %v161 = vpop.permute.xlu0 %160
  %164 = vset.pattern.permute.xlu0 0
  %165 = vperm.xlu0 %164, %v143
  %v166 = vpop.permute.xlu0 %165
  %169 = vset.pattern.permute.xlu0 0
  %170 = vperm.xlu0 %169, %v144
  %v171 = vpop.permute.xlu0 %170
  %174 = vset.pattern.permute.xlu0 0
  %175 = vperm.xlu0 %174, %v145
  %v176 = vpop.permute.xlu0 %175
  %179 = vset.pattern.permute.xlu0 0
  %180 = vperm.xlu0 %179, %v146
  %v181 = vpop.permute.xlu0 %180
  %184 = vset.pattern.permute.xlu0 0
  %185 = vperm.xlu0 %184, %v147
  %v186 = vpop.permute.xlu0 %185
  %v188 = vmul.f32 %v110, %v151
  %v189 = vmul.f32 %v113, %v156
  %v190 = vmul.f32 %v118, %v161
  %v191 = vmul.f32 %v121, %v166
  %v192 = vmul.f32 %v126, %v171
  %v193 = vmul.f32 %v129, %v176
  %v194 = vmul.f32 %v134, %v181
  %v195 = vmul.f32 %v137, %v186
  %v196 = vld [vmem:[%s3] sm:$0x1]
  %v198 = vlaneseq
  %v199 = vshrl.u32 %v198, 7
  %v200 = vsub.s32 0, %v199
  %v201 = vrot.slane %v196, %v200
  %v203 = vadd.f32 %v188, %v201
  %v204 = vadd.f32 %v189, %v201
  %v205 = vadd.f32 %v190, %v201
  %v206 = vadd.f32 %v191, %v201
  %v207 = vadd.f32 %v192, %v201
  %v208 = vadd.f32 %v193, %v201
  %v209 = vadd.f32 %v194, %v201
  %v210 = vadd.f32 %v195, %v201
  %v211 = vmax.f32 %v203, 0.0
  %v212 = vmax.f32 %v204, 0.0
  %v213 = vmax.f32 %v205, 0.0
  %v214 = vmax.f32 %v206, 0.0
  %v215 = vmax.f32 %v207, 0.0
  %v216 = vmax.f32 %v208, 0.0
  %v217 = vmax.f32 %v209, 0.0
  %v218 = vmax.f32 %v210, 0.0
  %v219 = vpack.c.bf16 %v212, %v211
  %v220 = vpack.c.bf16 %v214, %v213
  %v221 = vpack.c.bf16 %v216, %v215
  %v222 = vpack.c.bf16 %v218, %v217
  %v227 = vunpack.c.l.b16 %v219
  %v228 = vunpack.c.h.b16 %v219
  %v229 = vunpack.c.l.b16 %v220
  %v230 = vunpack.c.h.b16 %v220
  %v231 = vunpack.c.l.b16 %v221
  %v232 = vunpack.c.h.b16 %v221
  %v233 = vunpack.c.l.b16 %v222
  %v234 = vunpack.c.h.b16 %v222
  %v235 = vpack.c.b16 %v227, %v227
  %v236 = vpack.c.b16 %v228, %v228
  %v237 = vpack.c.b16 %v229, %v229
  %v238 = vpack.c.b16 %v230, %v230
  %v239 = vpack.c.b16 %v231, %v231
  %v240 = vpack.c.b16 %v232, %v232
  %v241 = vpack.c.b16 %v233, %v233
  %v242 = vpack.c.b16 %v234, %v234
  %vm251 = vcmask 257024
  %252 = vst.msk [vmem:[%s4] sm:$0xf] %vm251, %v235
  %253 = vst.msk [vmem:[%s4 + $0x4] sm:$0xf] %vm251, %v236
  %254 = vst.msk [vmem:[%s4 + $0x8] sm:$0xf] %vm251, %v237
  %255 = vst.msk [vmem:[%s4 + $0xc] sm:$0xf] %vm251, %v238
  %256 = vst.msk [vmem:[%s4 + $0x10] sm:$0xf] %vm251, %v239
  %257 = vst.msk [vmem:[%s4 + $0x14] sm:$0xf] %vm251, %v240
  %258 = vst.msk [vmem:[%s4 + $0x18] sm:$0xf] %vm251, %v241
  %259 = vst.msk [vmem:[%s4 + $0x1c] sm:$0xf] %vm251, %v242
  // Predicated region
  $region18: #{encoder_mesh_block_forward.10} parent=0 // pred_check
    _
  $region19: #{encoder_mesh_block_forward.10} parent=0 // pred_check_branch
    %261 = sbr.rel (0) target = $region21
  $region20: #{encoder_mesh_block_forward.10} parent=0 // pred_region
    _
  $region21: #{encoder_mesh_block_forward.10} parent=0 // pred_fallthru
    _
  // Predicated region
  $region22: #{encoder_mesh_block_forward.10} parent=0 // pred_check
    _
  $region23: #{encoder_mesh_block_forward.10} parent=0 // pred_check_branch
    %263 = sbr.rel (0) target = $region25
  $region24: #{encoder_mesh_block_forward.10} parent=0 // pred_region
    _
  $region25: #{encoder_mesh_block_forward.10} parent=0 // pred_fallthru
    _

// kernel: encoder_mesh_block_forward.9
$region0: #{encoder_mesh_block_forward.9}
  #allocation0 [shape = 'u32[]', space=smem, size = 0x4, offset = 0x4, fixed_abs, tag = 'smem constant byte address 0x4 - core index']
  #allocation1 [shape = 'u32[144,128]{1,0:T(1,128)}', space=vmem, size = 0x12000, scoped, tag = 'internal scratch']
  %s0 = inlined_call_operand.vmem [shape: bf16[112,24], index: 0, kind: input, shape index: {}]
  %s1 = inlined_call_operand.vmem [shape: bf16[112,9], index: 1, kind: input, shape index: {}]
  %s2 = inlined_call_operand.vmem [shape: bf16[24,32], index: 2, kind: input, shape index: {}]
  %s3 = inlined_call_operand.vmem [shape: f32[1,32], index: 3, kind: input, shape index: {}]
  %s4 = inlined_call_operand.vmem [shape: bf16[9,32], index: 4, kind: input, shape index: {}]
  %s5 = inlined_call_operand.vmem [shape: bf16[112,32], index: 5, kind: output, shape index: {}]
  %s6 = sld [smem:[#allocation0]]
  $region30: #{encoder_mesh_block_forward.9} parent=0
    _
  %s8 = ssub.s32 1, %s6
  %s9 = scalar_select 0, %s8, %s6
  // Predicated region
  $region2: #{encoder_mesh_block_forward.9} parent=0 // pred_check
    _
  $region3: #{encoder_mesh_block_forward.9} parent=0 // pred_check_branch
    %11 = sbr.rel (0) target = $region5
  $region4: #{encoder_mesh_block_forward.9} parent=0 // pred_region
    _
  $region5: #{encoder_mesh_block_forward.9} parent=0 // pred_fallthru
    _
  // Predicated region
  $region6: #{encoder_mesh_block_forward.9} parent=0 // pred_check
    _
  $region7: #{encoder_mesh_block_forward.9} parent=0 // pred_check_branch
    %13 = sbr.rel (0) target = $region9
  $region8: #{encoder_mesh_block_forward.9} parent=0 // pred_region
    _
  $region9: #{encoder_mesh_block_forward.9} parent=0 // pred_fallthru
    _
  // Predicated region
  $region10: #{encoder_mesh_block_forward.9} parent=0 // pred_check
    _
  $region11: #{encoder_mesh_block_forward.9} parent=0 // pred_check_branch
    %15 = sbr.rel (0) target = $region13
  $region12: #{encoder_mesh_block_forward.9} parent=0 // pred_region
    _
  $region13: #{encoder_mesh_block_forward.9} parent=0 // pred_fallthru
    _
  // Predicated region
  $region14: #{encoder_mesh_block_forward.9} parent=0 // pred_check
    _
  $region15: #{encoder_mesh_block_forward.9} parent=0 // pred_check_branch
    %17 = sbr.rel (0) target = $region17
  $region16: #{encoder_mesh_block_forward.9} parent=0 // pred_region
    _
  $region17: #{encoder_mesh_block_forward.9} parent=0 // pred_fallthru
    _
  // Predicated region
  $region18: #{encoder_mesh_block_forward.9} parent=0 // pred_check
    _
  $region19: #{encoder_mesh_block_forward.9} parent=0 // pred_check_branch
    %19 = sbr.rel (0) target = $region21
  $region20: #{encoder_mesh_block_forward.9} parent=0 // pred_region
    _
  $region21: #{encoder_mesh_block_forward.9} parent=0 // pred_fallthru
    _
  %v21 = vld [vmem:[%s0] sm:$0xf]
  %v22 = vld [vmem:[%s0 + $0x4] sm:$0xf]
  %v23 = vld [vmem:[%s0 + $0x8] sm:$0xf]
  %v24 = vld [vmem:[%s0 + $0xc] sm:$0xf]
  %v25 = vld [vmem:[%s0 + $0x10] sm:$0xf]
  %v26 = vld [vmem:[%s0 + $0x14] sm:$0xf]
  %v27 = vld [vmem:[%s0 + $0x18] sm:$0xf]
  %v28 = vld [vmem:[%s0 + $0x1c] sm:$0xf]
  %v29 = vld [vmem:[%s0 + $0x20] sm:$0xf]
  %v30 = vld [vmem:[%s0 + $0x24] sm:$0xf]
  %v31 = vld [vmem:[%s0 + $0x28] sm:$0xf]
  %v32 = vld [vmem:[%s0 + $0x2c] sm:$0xf]
  %v33 = vld [vmem:[%s0 + $0x30] sm:$0xf]
  %v34 = vld [vmem:[%s0 + $0x34] sm:$0xf]
  %v35 = vld [vmem:[%s2] sm:$0xf]
  %v36 = vld [vmem:[%s2 + $0x4] sm:$0xf]
  %v37 = vld [vmem:[%s2 + $0x8] sm:$0xf]
  %v38 = vld [vmem:[%s3] sm:$0x1]
  %v40 = vlaneseq
  %v41 = vshrl.u32 %v40, 7
  %v42 = vsub.s32 0, %v41
  %v43 = vrot.slane %v38, %v42
  %v59 = vunpack.c.l.b16 %v21
  %v60 = vunpack.c.l.b16 %v22
  %v61 = vunpack.c.l.b16 %v23
  %v62 = vunpack.c.l.b16 %v24
  %v63 = vunpack.c.l.b16 %v25
  %v64 = vunpack.c.l.b16 %v26
  %v65 = vunpack.c.l.b16 %v27
  %v66 = vunpack.c.l.b16 %v28
  %v67 = vunpack.c.l.b16 %v29
  %v68 = vunpack.c.l.b16 %v30
  %v69 = vunpack.c.l.b16 %v31
  %v70 = vunpack.c.l.b16 %v32
  %v71 = vunpack.c.l.b16 %v33
  %v72 = vunpack.c.l.b16 %v34
  %v73 = vpack.c.b16 %v60, %v59
  %v74 = vpack.c.b16 %v62, %v61
  %v75 = vpack.c.b16 %v64, %v63
  %v76 = vpack.c.b16 %v66, %v65
  %v77 = vpack.c.b16 %v68, %v67
  %v78 = vpack.c.b16 %v70, %v69
  %v79 = vpack.c.b16 %v72, %v71
  %v83 = vunpack.c.l.b16 %v35
  %v84 = vunpack.c.l.b16 %v36
  %v85 = vunpack.c.l.b16 %v37
  %v86 = vpack.c.b16 %v84, %v83
  %v87 = vpack.c.b16 %v85, %v85
  %vm89 = vcmask 195584
  %v91 = vsel %vm89, %v73, 0
  %v94 = vsel %vm89, %v74, 0
  %v97 = vsel %vm89, %v75, 0
  %v100 = vsel %vm89, %v76, 0
  %v103 = vsel %vm89, %v77, 0
  %v106 = vsel %vm89, %v78, 0
  %v109 = vsel %vm89, %v79, 0
  %vm111 = vcmask 1043456
  %v113 = vsel %vm111, %v87, 0
  %115 = vmatprep.subr.bf16.mxu0 0
  %116 = vmatpush1.bf16.msra.mxu0 %v86
  %117 = vmatprep.subr.bf16.mxu0 0
  %118 = vmatpush1.bf16.msra.mxu0 %v113
  %119 = vmatprep.subr.bf16.mxu0 0
  %120 = vmatpush1.bf16.msra.mxu0 0
  %121 = vmatprep.subr.bf16.mxu0 0
  %122 = vmatpush1.bf16.msra.mxu0 0
  %123 = vmatprep.subr.bf16.mxu0 0
  %124 = vmatpush1.bf16.msra.mxu0 0
  %125 = vmatprep.subr.bf16.mxu0 0
  %126 = vmatpush1.bf16.msra.mxu0 0
  %127 = vmatprep.subr.bf16.mxu0 0
  %128 = vmatpush1.bf16.msra.mxu0 0
  %129 = vmatprep.subr.bf16.mxu0 0
  %130 = vmatpush1.bf16.msra.mxu0 0
  %131 = vmatprep.subr.bf16.mxu0 0
  %132 = vmatpush1.bf16.msra.mxu0 0
  %133 = vmatprep.subr.bf16.mxu0 0
  %134 = vmatpush1.bf16.msra.mxu0 0
  %135 = vmatprep.subr.bf16.mxu0 0
  %136 = vmatpush1.bf16.msra.mxu0 0
  %137 = vmatprep.subr.bf16.mxu0 0
  %138 = vmatpush1.bf16.msra.mxu0 0
  %139 = vmatprep.subr.bf16.mxu0 0
  %140 = vmatpush1.bf16.msra.mxu0 0
  %141 = vmatprep.subr.bf16.mxu0 0
  %142 = vmatpush1.bf16.msra.mxu0 0
  %143 = vmatprep.subr.bf16.mxu0 0
  %144 = vmatpush1.bf16.msra.mxu0 0
  %145 = vmatprep.subr.bf16.mxu0 0
  %146 = vmatpush1.bf16.msra.mxu0 0
  %147 = vmatprep.mubr.bf16.mxu0 0
  %148 = vmatmul.mubr.bf16.gmra.mrb[0].mxu0 %v91
  %v149 = vpop.f32.mrb[0].mxu0
  %v150 = vadd.f32 %v43, %v149
  %v151 = vpop.f32.mrb[0].mxu0
  %v152 = vpop.f32.mrb[0].mxu0
  %v153 = vadd.f32 %v43, %v152
  %v154 = vpop.f32.mrb[0].mxu0
  %155 = vmatprep.mubr.bf16.mxu0 0
  %156 = vmatmul.mubr.bf16.gmra.mrb[0].mxu0 %v94
  %v157 = vpop.f32.mrb[0].mxu0
  %v158 = vadd.f32 %v43, %v157
  %v159 = vpop.f32.mrb[0].mxu0
  %v160 = vpop.f32.mrb[0].mxu0
  %v161 = vadd.f32 %v43, %v160
  %v162 = vpop.f32.mrb[0].mxu0
  %163 = vmatprep.mubr.bf16.mxu0 0
  %164 = vmatmul.mubr.bf16.gmra.mrb[0].mxu0 %v97
  %v165 = vpop.f32.mrb[0].mxu0
  %v166 = vadd.f32 %v43, %v165
  %v167 = vpop.f32.mrb[0].mxu0
  %v168 = vpop.f32.mrb[0].mxu0
  %v169 = vadd.f32 %v43, %v168
  %v170 = vpop.f32.mrb[0].mxu0
  %171 = vmatprep.mubr.bf16.mxu0 0
  %172 = vmatmul.mubr.bf16.gmra.mrb[0].mxu0 %v100
  %v173 = vpop.f32.mrb[0].mxu0
  %v174 = vadd.f32 %v43, %v173
  %v175 = vpop.f32.mrb[0].mxu0
  %v176 = vpop.f32.mrb[0].mxu0
  %v177 = vadd.f32 %v43, %v176
  %v178 = vpop.f32.mrb[0].mxu0
  %179 = vmatprep.mubr.bf16.mxu0 0
  %180 = vmatmul.mubr.bf16.gmra.mrb[0].mxu0 %v103
  %v181 = vpop.f32.mrb[0].mxu0
  %v182 = vadd.f32 %v43, %v181
  %v183 = vpop.f32.mrb[0].mxu0
  %v184 = vpop.f32.mrb[0].mxu0
  %v185 = vadd.f32 %v43, %v184
  %v186 = vpop.f32.mrb[0].mxu0
  %187 = vmatprep.mubr.bf16.mxu0 0
  %188 = vmatmul.mubr.bf16.gmra.mrb[0].mxu0 %v106
  %v189 = vpop.f32.mrb[0].mxu0
  %v190 = vadd.f32 %v43, %v189
  %v191 = vpop.f32.mrb[0].mxu0
  %v192 = vpop.f32.mrb[0].mxu0
  %v193 = vadd.f32 %v43, %v192
  %v194 = vpop.f32.mrb[0].mxu0
  %195 = vmatprep.mubr.bf16.mxu0 0
  %196 = vmatmul.mubr.bf16.gmra.mrb[0].mxu0 %v109
  %v197 = vpop.f32.mrb[0].mxu0
  %v198 = vadd.f32 %v43, %v197
  %v199 = vpop.f32.mrb[0].mxu0
  %v200 = vpop.f32.mrb[0].mxu0
  %v201 = vadd.f32 %v43, %v200
  %v202 = vpop.f32.mrb[0].mxu0
  %203 = vdwg.mxu0
  %v204 = vmax.f32 %v150, 0.0
  %v205 = vmax.f32 %v153, 0.0
  %v206 = vmax.f32 %v158, 0.0
  %v207 = vmax.f32 %v161, 0.0
  %v208 = vmax.f32 %v166, 0.0
  %v209 = vmax.f32 %v169, 0.0
  %v210 = vmax.f32 %v174, 0.0
  %v211 = vmax.f32 %v177, 0.0
  %v212 = vmax.f32 %v182, 0.0
  %v213 = vmax.f32 %v185, 0.0
  %v214 = vmax.f32 %v190, 0.0
  %v215 = vmax.f32 %v193, 0.0
  %v216 = vmax.f32 %v198, 0.0
  %v217 = vmax.f32 %v201, 0.0
  %v218 = vld [vmem:[%s1] sm:$0xf]
  %v219 = vld [vmem:[%s1 + $0x4] sm:$0xf]
  %v220 = vld [vmem:[%s1 + $0x8] sm:$0xf]
  %v221 = vld [vmem:[%s1 + $0xc] sm:$0xf]
  %v222 = vld [vmem:[%s1 + $0x10] sm:$0xf]
  %v223 = vld [vmem:[%s1 + $0x14] sm:$0xf]
  %v224 = vld [vmem:[%s1 + $0x18] sm:$0xf]
  %v225 = vld [vmem:[%s1 + $0x1c] sm:$0xf]
  %v226 = vld [vmem:[%s1 + $0x20] sm:$0xf]
  %v227 = vld [vmem:[%s1 + $0x24] sm:$0xf]
  %v228 = vld [vmem:[%s1 + $0x28] sm:$0xf]
  %v229 = vld [vmem:[%s1 + $0x2c] sm:$0xf]
  %v230 = vld [vmem:[%s1 + $0x30] sm:$0xf]
  %v231 = vld [vmem:[%s1 + $0x34] sm:$0xf]
  %v232 = vld [vmem:[%s4] sm:$0xf]
  %v233 = vld [vmem:[%s4 + $0x4] sm:$0x1]
  %v248 = vunpack.c.l.b16 %v218
  %v249 = vunpack.c.l.b16 %v219
  %v250 = vunpack.c.l.b16 %v220
  %v251 = vunpack.c.l.b16 %v221
  %v252 = vunpack.c.l.b16 %v222
  %v253 = vunpack.c.l.b16 %v223
  %v254 = vunpack.c.l.b16 %v224
  %v255 = vunpack.c.l.b16 %v225
  %v256 = vunpack.c.l.b16 %v226
  %v257 = vunpack.c.l.b16 %v227
  %v258 = vunpack.c.l.b16 %v228
  %v259 = vunpack.c.l.b16 %v229
  %v260 = vunpack.c.l.b16 %v230
  %v261 = vunpack.c.l.b16 %v231
  %v262 = vpack.c.b16 %v249, %v248
  %v263 = vpack.c.b16 %v251, %v250
  %v264 = vpack.c.b16 %v253, %v252
  %v265 = vpack.c.b16 %v255, %v254
  %v266 = vpack.c.b16 %v257, %v256
  %v267 = vpack.c.b16 %v259, %v258
  %v268 = vpack.c.b16 %v261, %v260
  %v271 = vunpack.c.l.b16 %v232
  %v272 = vunpack.c.l.b16 %v233
  %v273 = vpack.c.b16 %v272, %v271
  %vm274 = vcmask 72704
  %v276 = vsel %vm274, %v262, 0
  %v279 = vsel %vm274, %v263, 0
  %v282 = vsel %vm274, %v264, 0
  %v285 = vsel %vm274, %v265, 0
  %v288 = vsel %vm274, %v266, 0
  %v291 = vsel %vm274, %v267, 0
  %v294 = vsel %vm274, %v268, 0
  %vm296 = vcmask 1044480
  %v297 = vsel %vm111, 4294967295, 65535
  %v298 = vsel %vm296, %v297, 0
  %v300 = vand.u32 %v273, %v298
  %302 = vmatprep.subr.bf16.mxu0 0
  %303 = vmatpush1.bf16.msra.mxu0 %v300
  %304 = vmatprep.subr.bf16.mxu0 0
  %305 = vmatpush1.bf16.msra.mxu0 0
  %306 = vmatprep.subr.bf16.mxu0 0
  %307 = vmatpush1.bf16.msra.mxu0 0
  %308 = vmatprep.subr.bf16.mxu0 0
  %309 = vmatpush1.bf16.msra.mxu0 0
  %310 = vmatprep.subr.bf16.mxu0 0
  %311 = vmatpush1.bf16.msra.mxu0 0
  %312 = vmatprep.subr.bf16.mxu0 0
  %313 = vmatpush1.bf16.msra.mxu0 0
  %314 = vmatprep.subr.bf16.mxu0 0
  %315 = vmatpush1.bf16.msra.mxu0 0
  %316 = vmatprep.subr.bf16.mxu0 0
  %317 = vmatpush1.bf16.msra.mxu0 0
  %318 = vmatprep.subr.bf16.mxu0 0
  %319 = vmatpush1.bf16.msra.mxu0 0
  %320 = vmatprep.subr.bf16.mxu0 0
  %321 = vmatpush1.bf16.msra.mxu0 0
  %322 = vmatprep.subr.bf16.mxu0 0
  %323 = vmatpush1.bf16.msra.mxu0 0
  %324 = vmatprep.subr.bf16.mxu0 0
  %325 = vmatpush1.bf16.msra.mxu0 0
  %326 = vmatprep.subr.bf16.mxu0 0
  %327 = vmatpush1.bf16.msra.mxu0 0
  %328 = vmatprep.subr.bf16.mxu0 0
  %329 = vmatpush1.bf16.msra.mxu0 0
  %330 = vmatprep.subr.bf16.mxu0 0
  %331 = vmatpush1.bf16.msra.mxu0 0
  %332 = vmatprep.subr.bf16.mxu0 0
  %333 = vmatpush1.bf16.msra.mxu0 0
  %334 = vmatprep.mubr.bf16.mxu0 0
  %335 = vmatmul.mubr.bf16.gmra.mrb[0].mxu0 %v276
  %v336 = vpop.f32.mrb[0].mxu0
  %v337 = vadd.f32 0.0, %v336
  %v338 = vpop.f32.mrb[0].mxu0
  %v339 = vpop.f32.mrb[0].mxu0
  %v340 = vadd.f32 0.0, %v339
  %v341 = vpop.f32.mrb[0].mxu0
  %342 = vmatprep.mubr.bf16.mxu0 0
  %343 = vmatmul.mubr.bf16.gmra.mrb[0].mxu0 %v279
  %v344 = vpop.f32.mrb[0].mxu0
  %v345 = vadd.f32 0.0, %v344
  %v346 = vpop.f32.mrb[0].mxu0
  %v347 = vpop.f32.mrb[0].mxu0
  %v348 = vadd.f32 0.0, %v347
  %v349 = vpop.f32.mrb[0].mxu0
  %350 = vmatprep.mubr.bf16.mxu0 0
  %351 = vmatmul.mubr.bf16.gmra.mrb[0].mxu0 %v282
  %v352 = vpop.f32.mrb[0].mxu0
  %v353 = vadd.f32 0.0, %v352
  %v354 = vpop.f32.mrb[0].mxu0
  %v355 = vpop.f32.mrb[0].mxu0
  %v356 = vadd.f32 0.0, %v355
  %v357 = vpop.f32.mrb[0].mxu0
  %358 = vmatprep.mubr.bf16.mxu0 0
  %359 = vmatmul.mubr.bf16.gmra.mrb[0].mxu0 %v285
  %v360 = vpop.f32.mrb[0].mxu0
  %v361 = vadd.f32 0.0, %v360
  %v362 = vpop.f32.mrb[0].mxu0
  %v363 = vpop.f32.mrb[0].mxu0
  %v364 = vadd.f32 0.0, %v363
  %v365 = vpop.f32.mrb[0].mxu0
  %366 = vmatprep.mubr.bf16.mxu0 0
  %367 = vmatmul.mubr.bf16.gmra.mrb[0].mxu0 %v288
  %v368 = vpop.f32.mrb[0].mxu0
  %v369 = vadd.f32 0.0, %v368
  %v370 = vpop.f32.mrb[0].mxu0
  %v371 = vpop.f32.mrb[0].mxu0
  %v372 = vadd.f32 0.0, %v371
  %v373 = vpop.f32.mrb[0].mxu0
  %374 = vmatprep.mubr.bf16.mxu0 0
  %375 = vmatmul.mubr.bf16.gmra.mrb[0].mxu0 %v291
  %v376 = vpop.f32.mrb[0].mxu0
  %v377 = vadd.f32 0.0, %v376
  %v378 = vpop.f32.mrb[0].mxu0
  %v379 = vpop.f32.mrb[0].mxu0
  %v380 = vadd.f32 0.0, %v379
  %v381 = vpop.f32.mrb[0].mxu0
  %382 = vmatprep.mubr.bf16.mxu0 0
  %383 = vmatmul.mubr.bf16.gmra.mrb[0].mxu0 %v294
  %v384 = vpop.f32.mrb[0].mxu0
  %v385 = vadd.f32 0.0, %v384
  %v386 = vpop.f32.mrb[0].mxu0
  %v387 = vpop.f32.mrb[0].mxu0
  %v388 = vadd.f32 0.0, %v387
  %v389 = vpop.f32.mrb[0].mxu0
  %390 = vdwg.mxu0
  %v391 = vmul.f32 %v337, %v204
  %v392 = vmul.f32 %v340, %v205
  %v393 = vmul.f32 %v345, %v206
  %v394 = vmul.f32 %v348, %v207
  %v395 = vmul.f32 %v353, %v208
  %v396 = vmul.f32 %v356, %v209
  %v397 = vmul.f32 %v361, %v210
  %v398 = vmul.f32 %v364, %v211
  %v399 = vmul.f32 %v369, %v212
  %v400 = vmul.f32 %v372, %v213
  %v401 = vmul.f32 %v377, %v214
  %v402 = vmul.f32 %v380, %v215
  %v403 = vmul.f32 %v385, %v216
  %v404 = vmul.f32 %v388, %v217
  %v405 = vpack.c.bf16 %v392, %v391
  %v406 = vpack.c.bf16 %v394, %v393
  %v407 = vpack.c.bf16 %v396, %v395
  %v408 = vpack.c.bf16 %v398, %v397
  %v409 = vpack.c.bf16 %v400, %v399
  %v410 = vpack.c.bf16 %v402, %v401
  %v411 = vpack.c.bf16 %v404, %v403
  %v419 = vunpack.c.l.b16 %v405
  %v420 = vunpack.c.h.b16 %v405
  %v421 = vunpack.c.l.b16 %v406
  %v422 = vunpack.c.h.b16 %v406
  %v423 = vunpack.c.l.b16 %v407
  %v424 = vunpack.c.h.b16 %v407
  %v425 = vunpack.c.l.b16 %v408
  %v426 = vunpack.c.h.b16 %v408
  %v427 = vunpack.c.l.b16 %v409
  %v428 = vunpack.c.h.b16 %v409
  %v429 = vunpack.c.l.b16 %v410
  %v430 = vunpack.c.h.b16 %v410
  %v431 = vunpack.c.l.b16 %v411
  %v432 = vunpack.c.h.b16 %v411
  %v433 = vpack.c.b16 %v419, %v419
  %v434 = vpack.c.b16 %v420, %v420
  %v435 = vpack.c.b16 %v421, %v421
  %v436 = vpack.c.b16 %v422, %v422
  %v437 = vpack.c.b16 %v423, %v423
  %v438 = vpack.c.b16 %v424, %v424
  %v439 = vpack.c.b16 %v425, %v425
  %v440 = vpack.c.b16 %v426, %v426
  %v441 = vpack.c.b16 %v427, %v427
  %v442 = vpack.c.b16 %v428, %v428
  %v443 = vpack.c.b16 %v429, %v429
  %v444 = vpack.c.b16 %v430, %v430
  %v445 = vpack.c.b16 %v431, %v431
  %v446 = vpack.c.b16 %v432, %v432
  %vm461 = vcmask 257024
  %462 = vst.msk [vmem:[%s5] sm:$0xf] %vm461, %v433
  %463 = vst.msk [vmem:[%s5 + $0x4] sm:$0xf] %vm461, %v434
  %464 = vst.msk [vmem:[%s5 + $0x8] sm:$0xf] %vm461, %v435
  %465 = vst.msk [vmem:[%s5 + $0xc] sm:$0xf] %vm461, %v436
  %466 = vst.msk [vmem:[%s5 + $0x10] sm:$0xf] %vm461, %v437
  %467 = vst.msk [vmem:[%s5 + $0x14] sm:$0xf] %vm461, %v438
  %468 = vst.msk [vmem:[%s5 + $0x18] sm:$0xf] %vm461, %v439
  %469 = vst.msk [vmem:[%s5 + $0x1c] sm:$0xf] %vm461, %v440
  %470 = vst.msk [vmem:[%s5 + $0x20] sm:$0xf] %vm461, %v441
  %471 = vst.msk [vmem:[%s5 + $0x24] sm:$0xf] %vm461, %v442
  %472 = vst.msk [vmem:[%s5 + $0x28] sm:$0xf] %vm461, %v443
  %473 = vst.msk [vmem:[%s5 + $0x2c] sm:$0xf] %vm461, %v444
  %474 = vst.msk [vmem:[%s5 + $0x30] sm:$0xf] %vm461, %v445
  %475 = vst.msk [vmem:[%s5 + $0x34] sm:$0xf] %vm461, %v446
  // Predicated region
  $region22: #{encoder_mesh_block_forward.9} parent=0 // pred_check
    _
  $region23: #{encoder_mesh_block_forward.9} parent=0 // pred_check_branch
    %477 = sbr.rel (0) target = $region25
  $region24: #{encoder_mesh_block_forward.9} parent=0 // pred_region
    _
  $region25: #{encoder_mesh_block_forward.9} parent=0 // pred_fallthru
    _
  // Predicated region
  $region26: #{encoder_mesh_block_forward.9} parent=0 // pred_check
    _
  $region27: #{encoder_mesh_block_forward.9} parent=0 // pred_check_branch
    %479 = sbr.rel (0) target = $region29
  $region28: #{encoder_mesh_block_forward.9} parent=0 // pred_region
    _
  $region29: #{encoder_mesh_block_forward.9} parent=0 // pred_fallthru
    _

// kernel: encoder_mesh_block_forward.11
$region0: #{encoder_mesh_block_forward.11}
  #allocation0 [shape = 'u32[]', space=smem, size = 0x4, offset = 0x4, fixed_abs, tag = 'smem constant byte address 0x4 - core index']
  #allocation1 [shape = 'u32[144,128]{1,0:T(1,128)}', space=vmem, size = 0x12000, scoped, tag = 'internal scratch']
  %s0 = inlined_call_operand.vmem [shape: bf16[112,96], index: 0, kind: input, shape index: {}]
  %s1 = inlined_call_operand.vmem [shape: bf16[112,9], index: 1, kind: input, shape index: {}]
  %s2 = inlined_call_operand.vmem [shape: bf16[96,32], index: 2, kind: input, shape index: {}]
  %s3 = inlined_call_operand.vmem [shape: f32[1,32], index: 3, kind: input, shape index: {}]
  %s4 = inlined_call_operand.vmem [shape: bf16[9,32], index: 4, kind: input, shape index: {}]
  %s5 = inlined_call_operand.vmem [shape: bf16[112,32], index: 5, kind: output, shape index: {}]
  %s6 = sld [smem:[#allocation0]]
  $region30: #{encoder_mesh_block_forward.11} parent=0
    _
  %s8 = ssub.s32 1, %s6
  %s9 = scalar_select 0, %s8, %s6
  // Predicated region
  $region2: #{encoder_mesh_block_forward.11} parent=0 // pred_check
    _
  $region3: #{encoder_mesh_block_forward.11} parent=0 // pred_check_branch
    %11 = sbr.rel (0) target = $region5
  $region4: #{encoder_mesh_block_forward.11} parent=0 // pred_region
    _
  $region5: #{encoder_mesh_block_forward.11} parent=0 // pred_fallthru
    _
  // Predicated region
  $region6: #{encoder_mesh_block_forward.11} parent=0 // pred_check
    _
  $region7: #{encoder_mesh_block_forward.11} parent=0 // pred_check_branch
    %13 = sbr.rel (0) target = $region9
  $region8: #{encoder_mesh_block_forward.11} parent=0 // pred_region
    _
  $region9: #{encoder_mesh_block_forward.11} parent=0 // pred_fallthru
    _
  // Predicated region
  $region10: #{encoder_mesh_block_forward.11} parent=0 // pred_check
    _
  $region11: #{encoder_mesh_block_forward.11} parent=0 // pred_check_branch
    %15 = sbr.rel (0) target = $region13
  $region12: #{encoder_mesh_block_forward.11} parent=0 // pred_region
    _
  $region13: #{encoder_mesh_block_forward.11} parent=0 // pred_fallthru
    _
  // Predicated region
  $region14: #{encoder_mesh_block_forward.11} parent=0 // pred_check
    _
  $region15: #{encoder_mesh_block_forward.11} parent=0 // pred_check_branch
    %17 = sbr.rel (0) target = $region17
  $region16: #{encoder_mesh_block_forward.11} parent=0 // pred_region
    _
  $region17: #{encoder_mesh_block_forward.11} parent=0 // pred_fallthru
    _
  // Predicated region
  $region18: #{encoder_mesh_block_forward.11} parent=0 // pred_check
    _
  $region19: #{encoder_mesh_block_forward.11} parent=0 // pred_check_branch
    %19 = sbr.rel (0) target = $region21
  $region20: #{encoder_mesh_block_forward.11} parent=0 // pred_region
    _
  $region21: #{encoder_mesh_block_forward.11} parent=0 // pred_fallthru
    _
  %v21 = vld [vmem:[%s0] sm:$0xf]
  %v22 = vld [vmem:[%s0 + $0x4] sm:$0xf]
  %v23 = vld [vmem:[%s0 + $0x8] sm:$0xf]
  %v24 = vld [vmem:[%s0 + $0xc] sm:$0xf]
  %v25 = vld [vmem:[%s0 + $0x10] sm:$0xf]
  %v26 = vld [vmem:[%s0 + $0x14] sm:$0xf]
  %v27 = vld [vmem:[%s0 + $0x18] sm:$0xf]
  %v28 = vld [vmem:[%s0 + $0x1c] sm:$0xf]
  %v29 = vld [vmem:[%s0 + $0x20] sm:$0xf]
  %v30 = vld [vmem:[%s0 + $0x24] sm:$0xf]
  %v31 = vld [vmem:[%s0 + $0x28] sm:$0xf]
  %v32 = vld [vmem:[%s0 + $0x2c] sm:$0xf]
  %v33 = vld [vmem:[%s0 + $0x30] sm:$0xf]
  %v34 = vld [vmem:[%s0 + $0x34] sm:$0xf]
  %v35 = vld [vmem:[%s2] sm:$0xf]
  %v36 = vld [vmem:[%s2 + $0x4] sm:$0xf]
  %v37 = vld [vmem:[%s2 + $0x8] sm:$0xf]
  %v38 = vld [vmem:[%s2 + $0xc] sm:$0xf]
  %v39 = vld [vmem:[%s2 + $0x10] sm:$0xf]
  %v40 = vld [vmem:[%s2 + $0x14] sm:$0xf]
  %v41 = vld [vmem:[%s2 + $0x18] sm:$0xf]
  %v42 = vld [vmem:[%s2 + $0x1c] sm:$0xf]
  %v43 = vld [vmem:[%s2 + $0x20] sm:$0xf]
  %v44 = vld [vmem:[%s2 + $0x24] sm:$0xf]
  %v45 = vld [vmem:[%s2 + $0x28] sm:$0xf]
  %v46 = vld [vmem:[%s2 + $0x2c] sm:$0xf]
  %v47 = vld [vmem:[%s3] sm:$0x1]
  %v49 = vlaneseq
  %v50 = vshrl.u32 %v49, 7
  %v51 = vsub.s32 0, %v50
  %v52 = vrot.slane %v47, %v51
  %v68 = vunpack.c.l.b16 %v21
  %v69 = vunpack.c.l.b16 %v22
  %v70 = vunpack.c.l.b16 %v23
  %v71 = vunpack.c.l.b16 %v24
  %v72 = vunpack.c.l.b16 %v25
  %v73 = vunpack.c.l.b16 %v26
  %v74 = vunpack.c.l.b16 %v27
  %v75 = vunpack.c.l.b16 %v28
  %v76 = vunpack.c.l.b16 %v29
  %v77 = vunpack.c.l.b16 %v30
  %v78 = vunpack.c.l.b16 %v31
  %v79 = vunpack.c.l.b16 %v32
  %v80 = vunpack.c.l.b16 %v33
  %v81 = vunpack.c.l.b16 %v34
  %v82 = vpack.c.b16 %v69, %v68
  %v83 = vpack.c.b16 %v71, %v70
  %v84 = vpack.c.b16 %v73, %v72
  %v85 = vpack.c.b16 %v75, %v74
  %v86 = vpack.c.b16 %v77, %v76
  %v87 = vpack.c.b16 %v79, %v78
  %v88 = vpack.c.b16 %v81, %v80
  %v101 = vunpack.c.l.b16 %v35
  %v102 = vunpack.c.l.b16 %v36
  %v103 = vunpack.c.l.b16 %v37
  %v104 = vunpack.c.l.b16 %v38
  %v105 = vunpack.c.l.b16 %v39
  %v106 = vunpack.c.l.b16 %v40
  %v107 = vunpack.c.l.b16 %v41
  %v108 = vunpack.c.l.b16 %v42
  %v109 = vunpack.c.l.b16 %v43
  %v110 = vunpack.c.l.b16 %v44
  %v111 = vunpack.c.l.b16 %v45
  %v112 = vunpack.c.l.b16 %v46
  %v113 = vpack.c.b16 %v102, %v101
  %v114 = vpack.c.b16 %v104, %v103
  %v115 = vpack.c.b16 %v106, %v105
  %v116 = vpack.c.b16 %v108, %v107
  %v117 = vpack.c.b16 %v110, %v109
  %v118 = vpack.c.b16 %v112, %v111
  %vm125 = vcmask 785408
  %v127 = vsel %vm125, %v82, 0
  %v130 = vsel %vm125, %v83, 0
  %v133 = vsel %vm125, %v84, 0
  %v136 = vsel %vm125, %v85, 0
  %v139 = vsel %vm125, %v86, 0
  %v142 = vsel %vm125, %v87, 0
  %v145 = vsel %vm125, %v88, 0
  %147 = vmatprep.subr.bf16.mxu0 0
  %148 = vmatpush1.bf16.msra.mxu0 %v113
  %149 = vmatprep.subr.bf16.mxu0 0
  %150 = vmatpush1.bf16.msra.mxu0 %v114
  %151 = vmatprep.subr.bf16.mxu0 0
  %152 = vmatpush1.bf16.msra.mxu0 %v115
  %153 = vmatprep.subr.bf16.mxu0 0
  %154 = vmatpush1.bf16.msra.mxu0 %v116
  %155 = vmatprep.subr.bf16.mxu0 0
  %156 = vmatpush1.bf16.msra.mxu0 %v117
  %157 = vmatprep.subr.bf16.mxu0 0
  %158 = vmatpush1.bf16.msra.mxu0 %v118
  %159 = vmatprep.subr.bf16.mxu0 0
  %160 = vmatpush1.bf16.msra.mxu0 0
  %161 = vmatprep.subr.bf16.mxu0 0
  %162 = vmatpush1.bf16.msra.mxu0 0
  %163 = vmatprep.subr.bf16.mxu0 0
  %164 = vmatpush1.bf16.msra.mxu0 0
  %165 = vmatprep.subr.bf16.mxu0 0
  %166 = vmatpush1.bf16.msra.mxu0 0
  %167 = vmatprep.subr.bf16.mxu0 0
  %168 = vmatpush1.bf16.msra.mxu0 0
  %169 = vmatprep.subr.bf16.mxu0 0
  %170 = vmatpush1.bf16.msra.mxu0 0
  %171 = vmatprep.subr.bf16.mxu0 0
  %172 = vmatpush1.bf16.msra.mxu0 0
  %173 = vmatprep.subr.bf16.mxu0 0
  %174 = vmatpush1.bf16.msra.mxu0 0
  %175 = vmatprep.subr.bf16.mxu0 0
  %176 = vmatpush1.bf16.msra.mxu0 0
  %177 = vmatprep.subr.bf16.mxu0 0
  %178 = vmatpush1.bf16.msra.mxu0 0
  %179 = vmatprep.mubr.bf16.mxu0 0
  %180 = vmatmul.mubr.bf16.gmra.mrb[0].mxu0 %v127
  %v181 = vpop.f32.mrb[0].mxu0
  %v182 = vadd.f32 %v52, %v181
  %v183 = vpop.f32.mrb[0].mxu0
  %v184 = vpop.f32.mrb[0].mxu0
  %v185 = vadd.f32 %v52, %v184
  %v186 = vpop.f32.mrb[0].mxu0
  %187 = vmatprep.mubr.bf16.mxu0 0
  %188 = vmatmul.mubr.bf16.gmra.mrb[0].mxu0 %v130
  %v189 = vpop.f32.mrb[0].mxu0
  %v190 = vadd.f32 %v52, %v189
  %v191 = vpop.f32.mrb[0].mxu0
  %v192 = vpop.f32.mrb[0].mxu0
  %v193 = vadd.f32 %v52, %v192
  %v194 = vpop.f32.mrb[0].mxu0
  %195 = vmatprep.mubr.bf16.mxu0 0
  %196 = vmatmul.mubr.bf16.gmra.mrb[0].mxu0 %v133
  %v197 = vpop.f32.mrb[0].mxu0
  %v198 = vadd.f32 %v52, %v197
  %v199 = vpop.f32.mrb[0].mxu0
  %v200 = vpop.f32.mrb[0].mxu0
  %v201 = vadd.f32 %v52, %v200
  %v202 = vpop.f32.mrb[0].mxu0
  %203 = vmatprep.mubr.bf16.mxu0 0
  %204 = vmatmul.mubr.bf16.gmra.mrb[0].mxu0 %v136
  %v205 = vpop.f32.mrb[0].mxu0
  %v206 = vadd.f32 %v52, %v205
  %v207 = vpop.f32.mrb[0].mxu0
  %v208 = vpop.f32.mrb[0].mxu0
  %v209 = vadd.f32 %v52, %v208
  %v210 = vpop.f32.mrb[0].mxu0
  %211 = vmatprep.mubr.bf16.mxu0 0
  %212 = vmatmul.mubr.bf16.gmra.mrb[0].mxu0 %v139
  %v213 = vpop.f32.mrb[0].mxu0
  %v214 = vadd.f32 %v52, %v213
  %v215 = vpop.f32.mrb[0].mxu0
  %v216 = vpop.f32.mrb[0].mxu0
  %v217 = vadd.f32 %v52, %v216
  %v218 = vpop.f32.mrb[0].mxu0
  %219 = vmatprep.mubr.bf16.mxu0 0
  %220 = vmatmul.mubr.bf16.gmra.mrb[0].mxu0 %v142
  %v221 = vpop.f32.mrb[0].mxu0
  %v222 = vadd.f32 %v52, %v221
  %v223 = vpop.f32.mrb[0].mxu0
  %v224 = vpop.f32.mrb[0].mxu0
  %v225 = vadd.f32 %v52, %v224
  %v226 = vpop.f32.mrb[0].mxu0
  %227 = vmatprep.mubr.bf16.mxu0 0
  %228 = vmatmul.mubr.bf16.gmra.mrb[0].mxu0 %v145
  %v229 = vpop.f32.mrb[0].mxu0
  %v230 = vadd.f32 %v52, %v229
  %v231 = vpop.f32.mrb[0].mxu0
  %v232 = vpop.f32.mrb[0].mxu0
  %v233 = vadd.f32 %v52, %v232
  %v234 = vpop.f32.mrb[0].mxu0
  %235 = vdwg.mxu0
  %v236 = vmax.f32 %v182, 0.0
  %v237 = vmax.f32 %v185, 0.0
  %v238 = vmax.f32 %v190, 0.0
  %v239 = vmax.f32 %v193, 0.0
  %v240 = vmax.f32 %v198, 0.0
  %v241 = vmax.f32 %v201, 0.0
  %v242 = vmax.f32 %v206, 0.0
  %v243 = vmax.f32 %v209, 0.0
  %v244 = vmax.f32 %v214, 0.0
  %v245 = vmax.f32 %v217, 0.0
  %v246 = vmax.f32 %v222, 0.0
  %v247 = vmax.f32 %v225, 0.0
  %v248 = vmax.f32 %v230, 0.0
  %v249 = vmax.f32 %v233, 0.0
  %v250 = vld [vmem:[%s1] sm:$0xf]
  %v251 = vld [vmem:[%s1 + $0x4] sm:$0xf]
  %v252 = vld [vmem:[%s1 + $0x8] sm:$0xf]
  %v253 = vld [vmem:[%s1 + $0xc] sm:$0xf]
  %v254 = vld [vmem:[%s1 + $0x10] sm:$0xf]
  %v255 = vld [vmem:[%s1 + $0x14] sm:$0xf]
  %v256 = vld [vmem:[%s1 + $0x18] sm:$0xf]
  %v257 = vld [vmem:[%s1 + $0x1c] sm:$0xf]
  %v258 = vld [vmem:[%s1 + $0x20] sm:$0xf]
  %v259 = vld [vmem:[%s1 + $0x24] sm:$0xf]
  %v260 = vld [vmem:[%s1 + $0x28] sm:$0xf]
  %v261 = vld [vmem:[%s1 + $0x2c] sm:$0xf]
  %v262 = vld [vmem:[%s1 + $0x30] sm:$0xf]
  %v263 = vld [vmem:[%s1 + $0x34] sm:$0xf]
  %v264 = vld [vmem:[%s4] sm:$0xf]
  %v265 = vld [vmem:[%s4 + $0x4] sm:$0x1]
  %v280 = vunpack.c.l.b16 %v250
  %v281 = vunpack.c.l.b16 %v251
  %v282 = vunpack.c.l.b16 %v252
  %v283 = vunpack.c.l.b16 %v253
  %v284 = vunpack.c.l.b16 %v254
  %v285 = vunpack.c.l.b16 %v255
  %v286 = vunpack.c.l.b16 %v256
  %v287 = vunpack.c.l.b16 %v257
  %v288 = vunpack.c.l.b16 %v258
  %v289 = vunpack.c.l.b16 %v259
  %v290 = vunpack.c.l.b16 %v260
  %v291 = vunpack.c.l.b16 %v261
  %v292 = vunpack.c.l.b16 %v262
  %v293 = vunpack.c.l.b16 %v263
  %v294 = vpack.c.b16 %v281, %v280
  %v295 = vpack.c.b16 %v283, %v282
  %v296 = vpack.c.b16 %v285, %v284
  %v297 = vpack.c.b16 %v287, %v286
  %v298 = vpack.c.b16 %v289, %v288
  %v299 = vpack.c.b16 %v291, %v290
  %v300 = vpack.c.b16 %v293, %v292
  %v303 = vunpack.c.l.b16 %v264
  %v304 = vunpack.c.l.b16 %v265
  %v305 = vpack.c.b16 %v304, %v303
  %vm306 = vcmask 72704
  %v308 = vsel %vm306, %v294, 0
  %v311 = vsel %vm306, %v295, 0
  %v314 = vsel %vm306, %v296, 0
  %v317 = vsel %vm306, %v297, 0
  %v320 = vsel %vm306, %v298, 0
  %v323 = vsel %vm306, %v299, 0
  %v326 = vsel %vm306, %v300, 0
  %vm328 = vcmask 1043456
  %vm329 = vcmask 1044480
  %v330 = vsel %vm328, 4294967295, 65535
  %v331 = vsel %vm329, %v330, 0
  %v333 = vand.u32 %v305, %v331
  %335 = vmatprep.subr.bf16.mxu0 0
  %336 = vmatpush1.bf16.msra.mxu0 %v333
  %337 = vmatprep.subr.bf16.mxu0 0
  %338 = vmatpush1.bf16.msra.mxu0 0
  %339 = vmatprep.subr.bf16.mxu0 0
  %340 = vmatpush1.bf16.msra.mxu0 0
  %341 = vmatprep.subr.bf16.mxu0 0
  %342 = vmatpush1.bf16.msra.mxu0 0
  %343 = vmatprep.subr.bf16.mxu0 0
  %344 = vmatpush1.bf16.msra.mxu0 0
  %345 = vmatprep.subr.bf16.mxu0 0
  %346 = vmatpush1.bf16.msra.mxu0 0
  %347 = vmatprep.subr.bf16.mxu0 0
  %348 = vmatpush1.bf16.msra.mxu0 0
  %349 = vmatprep.subr.bf16.mxu0 0
  %350 = vmatpush1.bf16.msra.mxu0 0
  %351 = vmatprep.subr.bf16.mxu0 0
  %352 = vmatpush1.bf16.msra.mxu0 0
  %353 = vmatprep.subr.bf16.mxu0 0
  %354 = vmatpush1.bf16.msra.mxu0 0
  %355 = vmatprep.subr.bf16.mxu0 0
  %356 = vmatpush1.bf16.msra.mxu0 0
  %357 = vmatprep.subr.bf16.mxu0 0
  %358 = vmatpush1.bf16.msra.mxu0 0
  %359 = vmatprep.subr.bf16.mxu0 0
  %360 = vmatpush1.bf16.msra.mxu0 0
  %361 = vmatprep.subr.bf16.mxu0 0
  %362 = vmatpush1.bf16.msra.mxu0 0
  %363 = vmatprep.subr.bf16.mxu0 0
  %364 = vmatpush1.bf16.msra.mxu0 0
  %365 = vmatprep.subr.bf16.mxu0 0
  %366 = vmatpush1.bf16.msra.mxu0 0
  %367 = vmatprep.mubr.bf16.mxu0 0
  %368 = vmatmul.mubr.bf16.gmra.mrb[0].mxu0 %v308
  %v369 = vpop.f32.mrb[0].mxu0
  %v370 = vadd.f32 0.0, %v369
  %v371 = vpop.f32.mrb[0].mxu0
  %v372 = vpop.f32.mrb[0].mxu0
  %v373 = vadd.f32 0.0, %v372
  %v374 = vpop.f32.mrb[0].mxu0
  %375 = vmatprep.mubr.bf16.mxu0 0
  %376 = vmatmul.mubr.bf16.gmra.mrb[0].mxu0 %v311
  %v377 = vpop.f32.mrb[0].mxu0
  %v378 = vadd.f32 0.0, %v377
  %v379 = vpop.f32.mrb[0].mxu0
  %v380 = vpop.f32.mrb[0].mxu0
  %v381 = vadd.f32 0.0, %v380
  %v382 = vpop.f32.mrb[0].mxu0
  %383 = vmatprep.mubr.bf16.mxu0 0
  %384 = vmatmul.mubr.bf16.gmra.mrb[0].mxu0 %v314
  %v385 = vpop.f32.mrb[0].mxu0
  %v386 = vadd.f32 0.0, %v385
  %v387 = vpop.f32.mrb[0].mxu0
  %v388 = vpop.f32.mrb[0].mxu0
  %v389 = vadd.f32 0.0, %v388
  %v390 = vpop.f32.mrb[0].mxu0
  %391 = vmatprep.mubr.bf16.mxu0 0
  %392 = vmatmul.mubr.bf16.gmra.mrb[0].mxu0 %v317
  %v393 = vpop.f32.mrb[0].mxu0
  %v394 = vadd.f32 0.0, %v393
  %v395 = vpop.f32.mrb[0].mxu0
  %v396 = vpop.f32.mrb[0].mxu0
  %v397 = vadd.f32 0.0, %v396
  %v398 = vpop.f32.mrb[0].mxu0
  %399 = vmatprep.mubr.bf16.mxu0 0
  %400 = vmatmul.mubr.bf16.gmra.mrb[0].mxu0 %v320
  %v401 = vpop.f32.mrb[0].mxu0
  %v402 = vadd.f32 0.0, %v401
  %v403 = vpop.f32.mrb[0].mxu0
  %v404 = vpop.f32.mrb[0].mxu0
  %v405 = vadd.f32 0.0, %v404
  %v406 = vpop.f32.mrb[0].mxu0
  %407 = vmatprep.mubr.bf16.mxu0 0
  %408 = vmatmul.mubr.bf16.gmra.mrb[0].mxu0 %v323
  %v409 = vpop.f32.mrb[0].mxu0
  %v410 = vadd.f32 0.0, %v409
  %v411 = vpop.f32.mrb[0].mxu0
  %v412 = vpop.f32.mrb[0].mxu0
  %v413 = vadd.f32 0.0, %v412
  %v414 = vpop.f32.mrb[0].mxu0
  %415 = vmatprep.mubr.bf16.mxu0 0
  %416 = vmatmul.mubr.bf16.gmra.mrb[0].mxu0 %v326
  %v417 = vpop.f32.mrb[0].mxu0
  %v418 = vadd.f32 0.0, %v417
  %v419 = vpop.f32.mrb[0].mxu0
  %v420 = vpop.f32.mrb[0].mxu0
  %v421 = vadd.f32 0.0, %v420
  %v422 = vpop.f32.mrb[0].mxu0
  %423 = vdwg.mxu0
  %v424 = vmul.f32 %v370, %v236
  %v425 = vmul.f32 %v373, %v237
  %v426 = vmul.f32 %v378, %v238
  %v427 = vmul.f32 %v381, %v239
  %v428 = vmul.f32 %v386, %v240
  %v429 = vmul.f32 %v389, %v241
  %v430 = vmul.f32 %v394, %v242
  %v431 = vmul.f32 %v397, %v243
  %v432 = vmul.f32 %v402, %v244
  %v433 = vmul.f32 %v405, %v245
  %v434 = vmul.f32 %v410, %v246
  %v435 = vmul.f32 %v413, %v247
  %v436 = vmul.f32 %v418, %v248
  %v437 = vmul.f32 %v421, %v249
  %v438 = vpack.c.bf16 %v425, %v424
  %v439 = vpack.c.bf16 %v427, %v426
  %v440 = vpack.c.bf16 %v429, %v428
  %v441 = vpack.c.bf16 %v431, %v430
  %v442 = vpack.c.bf16 %v433, %v432
  %v443 = vpack.c.bf16 %v435, %v434
  %v444 = vpack.c.bf16 %v437, %v436
  %v452 = vunpack.c.l.b16 %v438
  %v453 = vunpack.c.h.b16 %v438
  %v454 = vunpack.c.l.b16 %v439
  %v455 = vunpack.c.h.b16 %v439
  %v456 = vunpack.c.l.b16 %v440
  %v457 = vunpack.c.h.b16 %v440
  %v458 = vunpack.c.l.b16 %v441
  %v459 = vunpack.c.h.b16 %v441
  %v460 = vunpack.c.l.b16 %v442
  %v461 = vunpack.c.h.b16 %v442
  %v462 = vunpack.c.l.b16 %v443
  %v463 = vunpack.c.h.b16 %v443
  %v464 = vunpack.c.l.b16 %v444
  %v465 = vunpack.c.h.b16 %v444
  %v466 = vpack.c.b16 %v452, %v452
  %v467 = vpack.c.b16 %v453, %v453
  %v468 = vpack.c.b16 %v454, %v454
  %v469 = vpack.c.b16 %v455, %v455
  %v470 = vpack.c.b16 %v456, %v456
  %v471 = vpack.c.b16 %v457, %v457
  %v472 = vpack.c.b16 %v458, %v458
  %v473 = vpack.c.b16 %v459, %v459
  %v474 = vpack.c.b16 %v460, %v460
  %v475 = vpack.c.b16 %v461, %v461
  %v476 = vpack.c.b16 %v462, %v462
  %v477 = vpack.c.b16 %v463, %v463
  %v478 = vpack.c.b16 %v464, %v464
  %v479 = vpack.c.b16 %v465, %v465
  %vm494 = vcmask 257024
  %495 = vst.msk [vmem:[%s5] sm:$0xf] %vm494, %v466
  %496 = vst.msk [vmem:[%s5 + $0x4] sm:$0xf] %vm494, %v467
  %497 = vst.msk [vmem:[%s5 + $0x8] sm:$0xf] %vm494, %v468
  %498 = vst.msk [vmem:[%s5 + $0xc] sm:$0xf] %vm494, %v469
  %499 = vst.msk [vmem:[%s5 + $0x10] sm:$0xf] %vm494, %v470
  %500 = vst.msk [vmem:[%s5 + $0x14] sm:$0xf] %vm494, %v471
  %501 = vst.msk [vmem:[%s5 + $0x18] sm:$0xf] %vm494, %v472
  %502 = vst.msk [vmem:[%s5 + $0x1c] sm:$0xf] %vm494, %v473
  %503 = vst.msk [vmem:[%s5 + $0x20] sm:$0xf] %vm494, %v474
  %504 = vst.msk [vmem:[%s5 + $0x24] sm:$0xf] %vm494, %v475
  %505 = vst.msk [vmem:[%s5 + $0x28] sm:$0xf] %vm494, %v476
  %506 = vst.msk [vmem:[%s5 + $0x2c] sm:$0xf] %vm494, %v477
  %507 = vst.msk [vmem:[%s5 + $0x30] sm:$0xf] %vm494, %v478
  %508 = vst.msk [vmem:[%s5 + $0x34] sm:$0xf] %vm494, %v479
  // Predicated region
  $region22: #{encoder_mesh_block_forward.11} parent=0 // pred_check
    _
  $region23: #{encoder_mesh_block_forward.11} parent=0 // pred_check_branch
    %510 = sbr.rel (0) target = $region25
  $region24: #{encoder_mesh_block_forward.11} parent=0 // pred_region
    _
  $region25: #{encoder_mesh_block_forward.11} parent=0 // pred_fallthru
    _
  // Predicated region
  $region26: #{encoder_mesh_block_forward.11} parent=0 // pred_check
    _
  $region27: #{encoder_mesh_block_forward.11} parent=0 // pred_check_branch
    %512 = sbr.rel (0) target = $region29
  $region28: #{encoder_mesh_block_forward.11} parent=0 // pred_region
    _
  $region29: #{encoder_mesh_block_forward.11} parent=0 // pred_fallthru
    _

// kernel: encoder_mesh_block_forward.12
$region0: #{encoder_mesh_block_forward.12}
  #allocation0 [shape = 'u32[]', space=smem, size = 0x4, offset = 0x4, fixed_abs, tag = 'smem constant byte address 0x4 - core index']
  #allocation1 [shape = 'u32[144,128]{1,0:T(1,128)}', space=vmem, size = 0x12000, scoped, tag = 'internal scratch']
  %s0 = inlined_call_operand.vmem [shape: bf16[64,8], index: 0, kind: input, shape index: {}]
  %s1 = inlined_call_operand.vmem [shape: bf16[64,32], index: 1, kind: input, shape index: {}]
  %s2 = inlined_call_operand.vmem [shape: f32[64,1], index: 2, kind: input, shape index: {}]
  %s3 = inlined_call_operand.vmem [shape: bf16[32,8], index: 3, kind: input, shape index: {}]
  %s4 = inlined_call_operand.vmem [shape: f32[1,8], index: 4, kind: input, shape index: {}]
  %s5 = inlined_call_operand.vmem [shape: bf16[64,16], index: 5, kind: output, shape index: {}]
  %s6 = sld [smem:[#allocation0]]
  $region30: #{encoder_mesh_block_forward.12} parent=0
    _
  %s8 = ssub.s32 1, %s6
  %s9 = scalar_select 0, %s8, %s6
  // Predicated region
  $region2: #{encoder_mesh_block_forward.12} parent=0 // pred_check
    _
  $region3: #{encoder_mesh_block_forward.12} parent=0 // pred_check_branch
    %11 = sbr.rel (0) target = $region5
  $region4: #{encoder_mesh_block_forward.12} parent=0 // pred_region
    _
  $region5: #{encoder_mesh_block_forward.12} parent=0 // pred_fallthru
    _
  // Predicated region
  $region6: #{encoder_mesh_block_forward.12} parent=0 // pred_check
    _
  $region7: #{encoder_mesh_block_forward.12} parent=0 // pred_check_branch
    %13 = sbr.rel (0) target = $region9
  $region8: #{encoder_mesh_block_forward.12} parent=0 // pred_region
    _
  $region9: #{encoder_mesh_block_forward.12} parent=0 // pred_fallthru
    _
  // Predicated region
  $region10: #{encoder_mesh_block_forward.12} parent=0 // pred_check
    _
  $region11: #{encoder_mesh_block_forward.12} parent=0 // pred_check_branch
    %15 = sbr.rel (0) target = $region13
  $region12: #{encoder_mesh_block_forward.12} parent=0 // pred_region
    _
  $region13: #{encoder_mesh_block_forward.12} parent=0 // pred_fallthru
    _
  // Predicated region
  $region14: #{encoder_mesh_block_forward.12} parent=0 // pred_check
    _
  $region15: #{encoder_mesh_block_forward.12} parent=0 // pred_check_branch
    %17 = sbr.rel (0) target = $region17
  $region16: #{encoder_mesh_block_forward.12} parent=0 // pred_region
    _
  $region17: #{encoder_mesh_block_forward.12} parent=0 // pred_fallthru
    _
  // Predicated region
  $region18: #{encoder_mesh_block_forward.12} parent=0 // pred_check
    _
  $region19: #{encoder_mesh_block_forward.12} parent=0 // pred_check_branch
    %19 = sbr.rel (0) target = $region21
  $region20: #{encoder_mesh_block_forward.12} parent=0 // pred_region
    _
  $region21: #{encoder_mesh_block_forward.12} parent=0 // pred_fallthru
    _
  %v21 = vld [vmem:[%s1] sm:$0xf]
  %v22 = vld [vmem:[%s1 + $0x4] sm:$0xf]
  %v23 = vld [vmem:[%s1 + $0x8] sm:$0xf]
  %v24 = vld [vmem:[%s1 + $0xc] sm:$0xf]
  %v25 = vld [vmem:[%s1 + $0x10] sm:$0xf]
  %v26 = vld [vmem:[%s1 + $0x14] sm:$0xf]
  %v27 = vld [vmem:[%s1 + $0x18] sm:$0xf]
  %v28 = vld [vmem:[%s1 + $0x1c] sm:$0xf]
  %v29 = vld [vmem:[%s3] sm:$0xf]
  %v30 = vld [vmem:[%s3 + $0x4] sm:$0xf]
  %v31 = vld [vmem:[%s3 + $0x8] sm:$0xf]
  %v32 = vld [vmem:[%s3 + $0xc] sm:$0xf]
  %v41 = vunpack.c.l.b16 %v21
  %v42 = vunpack.c.l.b16 %v22
  %v43 = vunpack.c.l.b16 %v23
  %v44 = vunpack.c.l.b16 %v24
  %v45 = vunpack.c.l.b16 %v25
  %v46 = vunpack.c.l.b16 %v26
  %v47 = vunpack.c.l.b16 %v27
  %v48 = vunpack.c.l.b16 %v28
  %v49 = vpack.c.b16 %v42, %v41
  %v50 = vpack.c.b16 %v44, %v43
  %v51 = vpack.c.b16 %v46, %v45
  %v52 = vpack.c.b16 %v48, %v47
  %v57 = vunpack.c.l.b16 %v29
  %v58 = vunpack.c.l.b16 %v30
  %v59 = vunpack.c.l.b16 %v31
  %v60 = vunpack.c.l.b16 %v32
  %v61 = vpack.c.b16 %v58, %v57
  %v62 = vpack.c.b16 %v60, %v59
  %vm65 = vcmask 261120
  %v67 = vsel %vm65, %v49, 0
  %v70 = vsel %vm65, %v50, 0
  %v73 = vsel %vm65, %v51, 0
  %v76 = vsel %vm65, %v52, 0
  %78 = vmatprep.subr.bf16.mxu0 0
  %79 = vmatpush1.bf16.msra.mxu0 %v61
  %80 = vmatprep.subr.bf16.mxu0 0
  %81 = vmatpush1.bf16.msra.mxu0 %v62
  %82 = vmatprep.subr.bf16.mxu0 0
  %83 = vmatpush1.bf16.msra.mxu0 0
  %84 = vmatprep.subr.bf16.mxu0 0
  %85 = vmatpush1.bf16.msra.mxu0 0
  %86 = vmatprep.subr.bf16.mxu0 0
  %87 = vmatpush1.bf16.msra.mxu0 0
  %88 = vmatprep.subr.bf16.mxu0 0
  %89 = vmatpush1.bf16.msra.mxu0 0
  %90 = vmatprep.subr.bf16.mxu0 0
  %91 = vmatpush1.bf16.msra.mxu0 0
  %92 = vmatprep.subr.bf16.mxu0 0
  %93 = vmatpush1.bf16.msra.mxu0 0
  %94 = vmatprep.subr.bf16.mxu0 0
  %95 = vmatpush1.bf16.msra.mxu0 0
  %96 = vmatprep.subr.bf16.mxu0 0
  %97 = vmatpush1.bf16.msra.mxu0 0
  %98 = vmatprep.subr.bf16.mxu0 0
  %99 = vmatpush1.bf16.msra.mxu0 0
  %100 = vmatprep.subr.bf16.mxu0 0
  %101 = vmatpush1.bf16.msra.mxu0 0
  %102 = vmatprep.subr.bf16.mxu0 0
  %103 = vmatpush1.bf16.msra.mxu0 0
  %104 = vmatprep.subr.bf16.mxu0 0
  %105 = vmatpush1.bf16.msra.mxu0 0
  %106 = vmatprep.subr.bf16.mxu0 0
  %107 = vmatpush1.bf16.msra.mxu0 0
  %108 = vmatprep.subr.bf16.mxu0 0
  %109 = vmatpush1.bf16.msra.mxu0 0
  %110 = vmatprep.mubr.bf16.mxu0 0
  %111 = vmatmul.mubr.bf16.gmra.mrb[0].mxu0 %v67
  %v112 = vpop.f32.mrb[0].mxu0
  %v113 = vadd.f32 0.0, %v112
  %v114 = vpop.f32.mrb[0].mxu0
  %v115 = vpop.f32.mrb[0].mxu0
  %v116 = vadd.f32 0.0, %v115
  %v117 = vpop.f32.mrb[0].mxu0
  %118 = vmatprep.mubr.bf16.mxu0 0
  %119 = vmatmul.mubr.bf16.gmra.mrb[0].mxu0 %v70
  %v120 = vpop.f32.mrb[0].mxu0
  %v121 = vadd.f32 0.0, %v120
  %v122 = vpop.f32.mrb[0].mxu0
  %v123 = vpop.f32.mrb[0].mxu0
  %v124 = vadd.f32 0.0, %v123
  %v125 = vpop.f32.mrb[0].mxu0
  %126 = vmatprep.mubr.bf16.mxu0 0
  %127 = vmatmul.mubr.bf16.gmra.mrb[0].mxu0 %v73
  %v128 = vpop.f32.mrb[0].mxu0
  %v129 = vadd.f32 0.0, %v128
  %v130 = vpop.f32.mrb[0].mxu0
  %v131 = vpop.f32.mrb[0].mxu0
  %v132 = vadd.f32 0.0, %v131
  %v133 = vpop.f32.mrb[0].mxu0
  %134 = vmatprep.mubr.bf16.mxu0 0
  %135 = vmatmul.mubr.bf16.gmra.mrb[0].mxu0 %v76
  %v136 = vpop.f32.mrb[0].mxu0
  %v137 = vadd.f32 0.0, %v136
  %v138 = vpop.f32.mrb[0].mxu0
  %v139 = vpop.f32.mrb[0].mxu0
  %v140 = vadd.f32 0.0, %v139
  %v141 = vpop.f32.mrb[0].mxu0
  %142 = vdwg.mxu0
  %v143 = vld [vmem:[%s2] sm:$0xff]
  %v144 = vld [vmem:[%s2 + $0x8] sm:$0xff]
  %v145 = vld [vmem:[%s2 + $0x10] sm:$0xff]
  %v146 = vld [vmem:[%s2 + $0x18] sm:$0xff]
  %v147 = vld [vmem:[%s2 + $0x20] sm:$0xff]
  %v148 = vld [vmem:[%s2 + $0x28] sm:$0xff]
  %v149 = vld [vmem:[%s2 + $0x30] sm:$0xff]
  %v150 = vld [vmem:[%s2 + $0x38] sm:$0xff]
  %152 = vset.pattern.permute.xlu0 0
  %153 = vperm.xlu0 %152, %v143
  %v154 = vpop.permute.xlu0 %153
  %157 = vset.pattern.permute.xlu0 0
  %158 = vperm.xlu0 %157, %v144
  %v159 = vpop.permute.xlu0 %158
  %162 = vset.pattern.permute.xlu0 0
  %163 = vperm.xlu0 %162, %v145
  %v164 = vpop.permute.xlu0 %163
  %167 = vset.pattern.permute.xlu0 0
  %168 = vperm.xlu0 %167, %v146
  %v169 = vpop.permute.xlu0 %168
  %172 = vset.pattern.permute.xlu0 0
  %173 = vperm.xlu0 %172, %v147
  %v174 = vpop.permute.xlu0 %173
  %177 = vset.pattern.permute.xlu0 0
  %178 = vperm.xlu0 %177, %v148
  %v179 = vpop.permute.xlu0 %178
  %182 = vset.pattern.permute.xlu0 0
  %183 = vperm.xlu0 %182, %v149
  %v184 = vpop.permute.xlu0 %183
  %187 = vset.pattern.permute.xlu0 0
  %188 = vperm.xlu0 %187, %v150
  %v189 = vpop.permute.xlu0 %188
  %v191 = vmul.f32 %v113, %v154
  %v192 = vmul.f32 %v116, %v159
  %v193 = vmul.f32 %v121, %v164
  %v194 = vmul.f32 %v124, %v169
  %v195 = vmul.f32 %v129, %v174
  %v196 = vmul.f32 %v132, %v179
  %v197 = vmul.f32 %v137, %v184
  %v198 = vmul.f32 %v140, %v189
  %v199 = vld [vmem:[%s4] sm:$0x1]
  %v201 = vlaneseq
  %v202 = vshrl.u32 %v201, 7
  %v203 = vsub.s32 0, %v202
  %v204 = vrot.slane %v199, %v203
  %v206 = vadd.f32 %v191, %v204
  %v207 = vadd.f32 %v192, %v204
  %v208 = vadd.f32 %v193, %v204
  %v209 = vadd.f32 %v194, %v204
  %v210 = vadd.f32 %v195, %v204
  %v211 = vadd.f32 %v196, %v204
  %v212 = vadd.f32 %v197, %v204
  %v213 = vadd.f32 %v198, %v204
  %v214 = vmax.f32 %v206, 0.0
  %v215 = vmax.f32 %v207, 0.0
  %v216 = vmax.f32 %v208, 0.0
  %v217 = vmax.f32 %v209, 0.0
  %v218 = vmax.f32 %v210, 0.0
  %v219 = vmax.f32 %v211, 0.0
  %v220 = vmax.f32 %v212, 0.0
  %v221 = vmax.f32 %v213, 0.0
  %v222 = vld [vmem:[%s0] sm:$0xf]
  %v223 = vld [vmem:[%s0 + $0x4] sm:$0xf]
  %v224 = vld [vmem:[%s0 + $0x8] sm:$0xf]
  %v225 = vld [vmem:[%s0 + $0xc] sm:$0xf]
  %v226 = vld [vmem:[%s0 + $0x10] sm:$0xf]
  %v227 = vld [vmem:[%s0 + $0x14] sm:$0xf]
  %v228 = vld [vmem:[%s0 + $0x18] sm:$0xf]
  %v229 = vld [vmem:[%s0 + $0x1c] sm:$0xf]
  %vm230 = vcmask 60416
  %231 = vst.msk [vmem:[%s5] sm:$0xf] %vm230, %v222
  %232 = vst.msk [vmem:[%s5 + $0x4] sm:$0xf] %vm230, %v223
  %233 = vst.msk [vmem:[%s5 + $0x8] sm:$0xf] %vm230, %v224
  %234 = vst.msk [vmem:[%s5 + $0xc] sm:$0xf] %vm230, %v225
  %235 = vst.msk [vmem:[%s5 + $0x10] sm:$0xf] %vm230, %v226
  %236 = vst.msk [vmem:[%s5 + $0x14] sm:$0xf] %vm230, %v227
  %237 = vst.msk [vmem:[%s5 + $0x18] sm:$0xf] %vm230, %v228
  %238 = vst.msk [vmem:[%s5 + $0x1c] sm:$0xf] %vm230, %v229
  %v239 = vpack.c.bf16 %v215, %v214
  %v240 = vpack.c.bf16 %v217, %v216
  %v241 = vpack.c.bf16 %v219, %v218
  %v242 = vpack.c.bf16 %v221, %v220
  %v247 = vunpack.c.l.b16 %v239
  %v248 = vunpack.c.h.b16 %v239
  %v249 = vunpack.c.l.b16 %v240
  %v250 = vunpack.c.h.b16 %v240
  %v251 = vunpack.c.l.b16 %v241
  %v252 = vunpack.c.h.b16 %v241
  %v253 = vunpack.c.l.b16 %v242
  %v254 = vunpack.c.h.b16 %v242
  %v255 = vpack.c.b16 %v247, %v247
  %v256 = vpack.c.b16 %v248, %v248
  %v257 = vpack.c.b16 %v249, %v249
  %v258 = vpack.c.b16 %v250, %v250
  %v259 = vpack.c.b16 %v251, %v251
  %v260 = vpack.c.b16 %v252, %v252
  %v261 = vpack.c.b16 %v253, %v253
  %v262 = vpack.c.b16 %v254, %v254
  %263 = vrot.lane.b32.xlu0 %v255, 8
  %v264 = vpop.permute.xlu0 %263
  %265 = vrot.lane.b32.xlu0 %v256, 8
  %v266 = vpop.permute.xlu0 %265
  %267 = vrot.lane.b32.xlu0 %v257, 8
  %v268 = vpop.permute.xlu0 %267
  %269 = vrot.lane.b32.xlu0 %v258, 8
  %v270 = vpop.permute.xlu0 %269
  %271 = vrot.lane.b32.xlu0 %v259, 8
  %v272 = vpop.permute.xlu0 %271
  %273 = vrot.lane.b32.xlu0 %v260, 8
  %v274 = vpop.permute.xlu0 %273
  %275 = vrot.lane.b32.xlu0 %v261, 8
  %v276 = vpop.permute.xlu0 %275
  %277 = vrot.lane.b32.xlu0 %v262, 8
  %v278 = vpop.permute.xlu0 %277
  %vm287 = vcmask 126016
  %288 = vst.msk [vmem:[%s5] sm:$0xf] %vm287, %v264
  %289 = vst.msk [vmem:[%s5 + $0x4] sm:$0xf] %vm287, %v266
  %290 = vst.msk [vmem:[%s5 + $0x8] sm:$0xf] %vm287, %v268
  %291 = vst.msk [vmem:[%s5 + $0xc] sm:$0xf] %vm287, %v270
  %292 = vst.msk [vmem:[%s5 + $0x10] sm:$0xf] %vm287, %v272
  %293 = vst.msk [vmem:[%s5 + $0x14] sm:$0xf] %vm287, %v274
  %294 = vst.msk [vmem:[%s5 + $0x18] sm:$0xf] %vm287, %v276
  %295 = vst.msk [vmem:[%s5 + $0x1c] sm:$0xf] %vm287, %v278
  // Predicated region
  $region22: #{encoder_mesh_block_forward.12} parent=0 // pred_check
    _
  $region23: #{encoder_mesh_block_forward.12} parent=0 // pred_check_branch
    %297 = sbr.rel (0) target = $region25
  $region24: #{encoder_mesh_block_forward.12} parent=0 // pred_region
    _
  $region25: #{encoder_mesh_block_forward.12} parent=0 // pred_fallthru
    _
  // Predicated region
  $region26: #{encoder_mesh_block_forward.12} parent=0 // pred_check
    _
  $region27: #{encoder_mesh_block_forward.12} parent=0 // pred_check_branch
    %299 = sbr.rel (0) target = $region29
  $region28: #{encoder_mesh_block_forward.12} parent=0 // pred_region
    _
  $region29: #{encoder_mesh_block_forward.12} parent=0 // pred_fallthru
    _

// kernel: encoder_mesh_block_forward.13
$region0: #{encoder_mesh_block_forward.13}
  #allocation0 [shape = 'u32[]', space=smem, size = 0x4, offset = 0x4, fixed_abs, tag = 'smem constant byte address 0x4 - core index']
  #allocation1 [shape = 'u32[144,128]{1,0:T(1,128)}', space=vmem, size = 0x12000, scoped, tag = 'internal scratch']
  %s0 = inlined_call_operand.vmem [shape: bf16[112,48], index: 0, kind: input, shape index: {}]
  %s1 = inlined_call_operand.vmem [shape: bf16[112,9], index: 1, kind: input, shape index: {}]
  %s2 = inlined_call_operand.vmem [shape: bf16[48,32], index: 2, kind: input, shape index: {}]
  %s3 = inlined_call_operand.vmem [shape: f32[1,32], index: 3, kind: input, shape index: {}]
  %s4 = inlined_call_operand.vmem [shape: bf16[9,32], index: 4, kind: input, shape index: {}]
  %s5 = inlined_call_operand.vmem [shape: bf16[112,32], index: 5, kind: output, shape index: {}]
  %s6 = sld [smem:[#allocation0]]
  $region30: #{encoder_mesh_block_forward.13} parent=0
    _
  %s8 = ssub.s32 1, %s6
  %s9 = scalar_select 0, %s8, %s6
  // Predicated region
  $region2: #{encoder_mesh_block_forward.13} parent=0 // pred_check
    _
  $region3: #{encoder_mesh_block_forward.13} parent=0 // pred_check_branch
    %11 = sbr.rel (0) target = $region5
  $region4: #{encoder_mesh_block_forward.13} parent=0 // pred_region
    _
  $region5: #{encoder_mesh_block_forward.13} parent=0 // pred_fallthru
    _
  // Predicated region
  $region6: #{encoder_mesh_block_forward.13} parent=0 // pred_check
    _
  $region7: #{encoder_mesh_block_forward.13} parent=0 // pred_check_branch
    %13 = sbr.rel (0) target = $region9
  $region8: #{encoder_mesh_block_forward.13} parent=0 // pred_region
    _
  $region9: #{encoder_mesh_block_forward.13} parent=0 // pred_fallthru
    _
  // Predicated region
  $region10: #{encoder_mesh_block_forward.13} parent=0 // pred_check
    _
  $region11: #{encoder_mesh_block_forward.13} parent=0 // pred_check_branch
    %15 = sbr.rel (0) target = $region13
  $region12: #{encoder_mesh_block_forward.13} parent=0 // pred_region
    _
  $region13: #{encoder_mesh_block_forward.13} parent=0 // pred_fallthru
    _
  // Predicated region
  $region14: #{encoder_mesh_block_forward.13} parent=0 // pred_check
    _
  $region15: #{encoder_mesh_block_forward.13} parent=0 // pred_check_branch
    %17 = sbr.rel (0) target = $region17
  $region16: #{encoder_mesh_block_forward.13} parent=0 // pred_region
    _
  $region17: #{encoder_mesh_block_forward.13} parent=0 // pred_fallthru
    _
  // Predicated region
  $region18: #{encoder_mesh_block_forward.13} parent=0 // pred_check
    _
  $region19: #{encoder_mesh_block_forward.13} parent=0 // pred_check_branch
    %19 = sbr.rel (0) target = $region21
  $region20: #{encoder_mesh_block_forward.13} parent=0 // pred_region
    _
  $region21: #{encoder_mesh_block_forward.13} parent=0 // pred_fallthru
    _
  %v21 = vld [vmem:[%s0] sm:$0xf]
  %v22 = vld [vmem:[%s0 + $0x4] sm:$0xf]
  %v23 = vld [vmem:[%s0 + $0x8] sm:$0xf]
  %v24 = vld [vmem:[%s0 + $0xc] sm:$0xf]
  %v25 = vld [vmem:[%s0 + $0x10] sm:$0xf]
  %v26 = vld [vmem:[%s0 + $0x14] sm:$0xf]
  %v27 = vld [vmem:[%s0 + $0x18] sm:$0xf]
  %v28 = vld [vmem:[%s0 + $0x1c] sm:$0xf]
  %v29 = vld [vmem:[%s0 + $0x20] sm:$0xf]
  %v30 = vld [vmem:[%s0 + $0x24] sm:$0xf]
  %v31 = vld [vmem:[%s0 + $0x28] sm:$0xf]
  %v32 = vld [vmem:[%s0 + $0x2c] sm:$0xf]
  %v33 = vld [vmem:[%s0 + $0x30] sm:$0xf]
  %v34 = vld [vmem:[%s0 + $0x34] sm:$0xf]
  %v35 = vld [vmem:[%s2] sm:$0xf]
  %v36 = vld [vmem:[%s2 + $0x4] sm:$0xf]
  %v37 = vld [vmem:[%s2 + $0x8] sm:$0xf]
  %v38 = vld [vmem:[%s2 + $0xc] sm:$0xf]
  %v39 = vld [vmem:[%s2 + $0x10] sm:$0xf]
  %v40 = vld [vmem:[%s2 + $0x14] sm:$0xf]
  %v41 = vld [vmem:[%s3] sm:$0x1]
  %v43 = vlaneseq
  %v44 = vshrl.u32 %v43, 7
  %v45 = vsub.s32 0, %v44
  %v46 = vrot.slane %v41, %v45
  %v62 = vunpack.c.l.b16 %v21
  %v63 = vunpack.c.l.b16 %v22
  %v64 = vunpack.c.l.b16 %v23
  %v65 = vunpack.c.l.b16 %v24
  %v66 = vunpack.c.l.b16 %v25
  %v67 = vunpack.c.l.b16 %v26
  %v68 = vunpack.c.l.b16 %v27
  %v69 = vunpack.c.l.b16 %v28
  %v70 = vunpack.c.l.b16 %v29
  %v71 = vunpack.c.l.b16 %v30
  %v72 = vunpack.c.l.b16 %v31
  %v73 = vunpack.c.l.b16 %v32
  %v74 = vunpack.c.l.b16 %v33
  %v75 = vunpack.c.l.b16 %v34
  %v76 = vpack.c.b16 %v63, %v62
  %v77 = vpack.c.b16 %v65, %v64
  %v78 = vpack.c.b16 %v67, %v66
  %v79 = vpack.c.b16 %v69, %v68
  %v80 = vpack.c.b16 %v71, %v70
  %v81 = vpack.c.b16 %v73, %v72
  %v82 = vpack.c.b16 %v75, %v74
  %v89 = vunpack.c.l.b16 %v35
  %v90 = vunpack.c.l.b16 %v36
  %v91 = vunpack.c.l.b16 %v37
  %v92 = vunpack.c.l.b16 %v38
  %v93 = vunpack.c.l.b16 %v39
  %v94 = vunpack.c.l.b16 %v40
  %v95 = vpack.c.b16 %v90, %v89
  %v96 = vpack.c.b16 %v92, %v91
  %v97 = vpack.c.b16 %v94, %v93
  %vm101 = vcmask 392192
  %v103 = vsel %vm101, %v76, 0
  %v106 = vsel %vm101, %v77, 0
  %v109 = vsel %vm101, %v78, 0
  %v112 = vsel %vm101, %v79, 0
  %v115 = vsel %vm101, %v80, 0
  %v118 = vsel %vm101, %v81, 0
  %v121 = vsel %vm101, %v82, 0
  %123 = vmatprep.subr.bf16.mxu0 0
  %124 = vmatpush1.bf16.msra.mxu0 %v95
  %125 = vmatprep.subr.bf16.mxu0 0
  %126 = vmatpush1.bf16.msra.mxu0 %v96
  %127 = vmatprep.subr.bf16.mxu0 0
  %128 = vmatpush1.bf16.msra.mxu0 %v97
  %129 = vmatprep.subr.bf16.mxu0 0
  %130 = vmatpush1.bf16.msra.mxu0 0
  %131 = vmatprep.subr.bf16.mxu0 0
  %132 = vmatpush1.bf16.msra.mxu0 0
  %133 = vmatprep.subr.bf16.mxu0 0
  %134 = vmatpush1.bf16.msra.mxu0 0
  %135 = vmatprep.subr.bf16.mxu0 0
  %136 = vmatpush1.bf16.msra.mxu0 0
  %137 = vmatprep.subr.bf16.mxu0 0
  %138 = vmatpush1.bf16.msra.mxu0 0
  %139 = vmatprep.subr.bf16.mxu0 0
  %140 = vmatpush1.bf16.msra.mxu0 0
  %141 = vmatprep.subr.bf16.mxu0 0
  %142 = vmatpush1.bf16.msra.mxu0 0
  %143 = vmatprep.subr.bf16.mxu0 0
  %144 = vmatpush1.bf16.msra.mxu0 0
  %145 = vmatprep.subr.bf16.mxu0 0
  %146 = vmatpush1.bf16.msra.mxu0 0
  %147 = vmatprep.subr.bf16.mxu0 0
  %148 = vmatpush1.bf16.msra.mxu0 0
  %149 = vmatprep.subr.bf16.mxu0 0
  %150 = vmatpush1.bf16.msra.mxu0 0
  %151 = vmatprep.subr.bf16.mxu0 0
  %152 = vmatpush1.bf16.msra.mxu0 0
  %153 = vmatprep.subr.bf16.mxu0 0
  %154 = vmatpush1.bf16.msra.mxu0 0
  %155 = vmatprep.mubr.bf16.mxu0 0
  %156 = vmatmul.mubr.bf16.gmra.mrb[0].mxu0 %v103
  %v157 = vpop.f32.mrb[0].mxu0
  %v158 = vadd.f32 %v46, %v157
  %v159 = vpop.f32.mrb[0].mxu0
  %v160 = vpop.f32.mrb[0].mxu0
  %v161 = vadd.f32 %v46, %v160
  %v162 = vpop.f32.mrb[0].mxu0
  %163 = vmatprep.mubr.bf16.mxu0 0
  %164 = vmatmul.mubr.bf16.gmra.mrb[0].mxu0 %v106
  %v165 = vpop.f32.mrb[0].mxu0
  %v166 = vadd.f32 %v46, %v165
  %v167 = vpop.f32.mrb[0].mxu0
  %v168 = vpop.f32.mrb[0].mxu0
  %v169 = vadd.f32 %v46, %v168
  %v170 = vpop.f32.mrb[0].mxu0
  %171 = vmatprep.mubr.bf16.mxu0 0
  %172 = vmatmul.mubr.bf16.gmra.mrb[0].mxu0 %v109
  %v173 = vpop.f32.mrb[0].mxu0
  %v174 = vadd.f32 %v46, %v173
  %v175 = vpop.f32.mrb[0].mxu0
  %v176 = vpop.f32.mrb[0].mxu0
  %v177 = vadd.f32 %v46, %v176
  %v178 = vpop.f32.mrb[0].mxu0
  %179 = vmatprep.mubr.bf16.mxu0 0
  %180 = vmatmul.mubr.bf16.gmra.mrb[0].mxu0 %v112
  %v181 = vpop.f32.mrb[0].mxu0
  %v182 = vadd.f32 %v46, %v181
  %v183 = vpop.f32.mrb[0].mxu0
  %v184 = vpop.f32.mrb[0].mxu0
  %v185 = vadd.f32 %v46, %v184
  %v186 = vpop.f32.mrb[0].mxu0
  %187 = vmatprep.mubr.bf16.mxu0 0
  %188 = vmatmul.mubr.bf16.gmra.mrb[0].mxu0 %v115
  %v189 = vpop.f32.mrb[0].mxu0
  %v190 = vadd.f32 %v46, %v189
  %v191 = vpop.f32.mrb[0].mxu0
  %v192 = vpop.f32.mrb[0].mxu0
  %v193 = vadd.f32 %v46, %v192
  %v194 = vpop.f32.mrb[0].mxu0
  %195 = vmatprep.mubr.bf16.mxu0 0
  %196 = vmatmul.mubr.bf16.gmra.mrb[0].mxu0 %v118
  %v197 = vpop.f32.mrb[0].mxu0
  %v198 = vadd.f32 %v46, %v197
  %v199 = vpop.f32.mrb[0].mxu0
  %v200 = vpop.f32.mrb[0].mxu0
  %v201 = vadd.f32 %v46, %v200
  %v202 = vpop.f32.mrb[0].mxu0
  %203 = vmatprep.mubr.bf16.mxu0 0
  %204 = vmatmul.mubr.bf16.gmra.mrb[0].mxu0 %v121
  %v205 = vpop.f32.mrb[0].mxu0
  %v206 = vadd.f32 %v46, %v205
  %v207 = vpop.f32.mrb[0].mxu0
  %v208 = vpop.f32.mrb[0].mxu0
  %v209 = vadd.f32 %v46, %v208
  %v210 = vpop.f32.mrb[0].mxu0
  %211 = vdwg.mxu0
  %v212 = vmax.f32 %v158, 0.0
  %v213 = vmax.f32 %v161, 0.0
  %v214 = vmax.f32 %v166, 0.0
  %v215 = vmax.f32 %v169, 0.0
  %v216 = vmax.f32 %v174, 0.0
  %v217 = vmax.f32 %v177, 0.0
  %v218 = vmax.f32 %v182, 0.0
  %v219 = vmax.f32 %v185, 0.0
  %v220 = vmax.f32 %v190, 0.0
  %v221 = vmax.f32 %v193, 0.0
  %v222 = vmax.f32 %v198, 0.0
  %v223 = vmax.f32 %v201, 0.0
  %v224 = vmax.f32 %v206, 0.0
  %v225 = vmax.f32 %v209, 0.0
  %v226 = vld [vmem:[%s1] sm:$0xf]
  %v227 = vld [vmem:[%s1 + $0x4] sm:$0xf]
  %v228 = vld [vmem:[%s1 + $0x8] sm:$0xf]
  %v229 = vld [vmem:[%s1 + $0xc] sm:$0xf]
  %v230 = vld [vmem:[%s1 + $0x10] sm:$0xf]
  %v231 = vld [vmem:[%s1 + $0x14] sm:$0xf]
  %v232 = vld [vmem:[%s1 + $0x18] sm:$0xf]
  %v233 = vld [vmem:[%s1 + $0x1c] sm:$0xf]
  %v234 = vld [vmem:[%s1 + $0x20] sm:$0xf]
  %v235 = vld [vmem:[%s1 + $0x24] sm:$0xf]
  %v236 = vld [vmem:[%s1 + $0x28] sm:$0xf]
  %v237 = vld [vmem:[%s1 + $0x2c] sm:$0xf]
  %v238 = vld [vmem:[%s1 + $0x30] sm:$0xf]
  %v239 = vld [vmem:[%s1 + $0x34] sm:$0xf]
  %v240 = vld [vmem:[%s4] sm:$0xf]
  %v241 = vld [vmem:[%s4 + $0x4] sm:$0x1]
  %v256 = vunpack.c.l.b16 %v226
  %v257 = vunpack.c.l.b16 %v227
  %v258 = vunpack.c.l.b16 %v228
  %v259 = vunpack.c.l.b16 %v229
  %v260 = vunpack.c.l.b16 %v230
  %v261 = vunpack.c.l.b16 %v231
  %v262 = vunpack.c.l.b16 %v232
  %v263 = vunpack.c.l.b16 %v233
  %v264 = vunpack.c.l.b16 %v234
  %v265 = vunpack.c.l.b16 %v235
  %v266 = vunpack.c.l.b16 %v236
  %v267 = vunpack.c.l.b16 %v237
  %v268 = vunpack.c.l.b16 %v238
  %v269 = vunpack.c.l.b16 %v239
  %v270 = vpack.c.b16 %v257, %v256
  %v271 = vpack.c.b16 %v259, %v258
  %v272 = vpack.c.b16 %v261, %v260
  %v273 = vpack.c.b16 %v263, %v262
  %v274 = vpack.c.b16 %v265, %v264
  %v275 = vpack.c.b16 %v267, %v266
  %v276 = vpack.c.b16 %v269, %v268
  %v279 = vunpack.c.l.b16 %v240
  %v280 = vunpack.c.l.b16 %v241
  %v281 = vpack.c.b16 %v280, %v279
  %vm282 = vcmask 72704
  %v284 = vsel %vm282, %v270, 0
  %v287 = vsel %vm282, %v271, 0
  %v290 = vsel %vm282, %v272, 0
  %v293 = vsel %vm282, %v273, 0
  %v296 = vsel %vm282, %v274, 0
  %v299 = vsel %vm282, %v275, 0
  %v302 = vsel %vm282, %v276, 0
  %vm304 = vcmask 1043456
  %vm305 = vcmask 1044480
  %v306 = vsel %vm304, 4294967295, 65535
  %v307 = vsel %vm305, %v306, 0
  %v309 = vand.u32 %v281, %v307
  %311 = vmatprep.subr.bf16.mxu0 0
  %312 = vmatpush1.bf16.msra.mxu0 %v309
  %313 = vmatprep.subr.bf16.mxu0 0
  %314 = vmatpush1.bf16.msra.mxu0 0
  %315 = vmatprep.subr.bf16.mxu0 0
  %316 = vmatpush1.bf16.msra.mxu0 0
  %317 = vmatprep.subr.bf16.mxu0 0
  %318 = vmatpush1.bf16.msra.mxu0 0
  %319 = vmatprep.subr.bf16.mxu0 0
  %320 = vmatpush1.bf16.msra.mxu0 0
  %321 = vmatprep.subr.bf16.mxu0 0
  %322 = vmatpush1.bf16.msra.mxu0 0
  %323 = vmatprep.subr.bf16.mxu0 0
  %324 = vmatpush1.bf16.msra.mxu0 0
  %325 = vmatprep.subr.bf16.mxu0 0
  %326 = vmatpush1.bf16.msra.mxu0 0
  %327 = vmatprep.subr.bf16.mxu0 0
  %328 = vmatpush1.bf16.msra.mxu0 0
  %329 = vmatprep.subr.bf16.mxu0 0
  %330 = vmatpush1.bf16.msra.mxu0 0
  %331 = vmatprep.subr.bf16.mxu0 0
  %332 = vmatpush1.bf16.msra.mxu0 0
  %333 = vmatprep.subr.bf16.mxu0 0
  %334 = vmatpush1.bf16.msra.mxu0 0
  %335 = vmatprep.subr.bf16.mxu0 0
  %336 = vmatpush1.bf16.msra.mxu0 0
  %337 = vmatprep.subr.bf16.mxu0 0
  %338 = vmatpush1.bf16.msra.mxu0 0
  %339 = vmatprep.subr.bf16.mxu0 0
  %340 = vmatpush1.bf16.msra.mxu0 0
  %341 = vmatprep.subr.bf16.mxu0 0
  %342 = vmatpush1.bf16.msra.mxu0 0
  %343 = vmatprep.mubr.bf16.mxu0 0
  %344 = vmatmul.mubr.bf16.gmra.mrb[0].mxu0 %v284
  %v345 = vpop.f32.mrb[0].mxu0
  %v346 = vadd.f32 0.0, %v345
  %v347 = vpop.f32.mrb[0].mxu0
  %v348 = vpop.f32.mrb[0].mxu0
  %v349 = vadd.f32 0.0, %v348
  %v350 = vpop.f32.mrb[0].mxu0
  %351 = vmatprep.mubr.bf16.mxu0 0
  %352 = vmatmul.mubr.bf16.gmra.mrb[0].mxu0 %v287
  %v353 = vpop.f32.mrb[0].mxu0
  %v354 = vadd.f32 0.0, %v353
  %v355 = vpop.f32.mrb[0].mxu0
  %v356 = vpop.f32.mrb[0].mxu0
  %v357 = vadd.f32 0.0, %v356
  %v358 = vpop.f32.mrb[0].mxu0
  %359 = vmatprep.mubr.bf16.mxu0 0
  %360 = vmatmul.mubr.bf16.gmra.mrb[0].mxu0 %v290
  %v361 = vpop.f32.mrb[0].mxu0
  %v362 = vadd.f32 0.0, %v361
  %v363 = vpop.f32.mrb[0].mxu0
  %v364 = vpop.f32.mrb[0].mxu0
  %v365 = vadd.f32 0.0, %v364
  %v366 = vpop.f32.mrb[0].mxu0
  %367 = vmatprep.mubr.bf16.mxu0 0
  %368 = vmatmul.mubr.bf16.gmra.mrb[0].mxu0 %v293
  %v369 = vpop.f32.mrb[0].mxu0
  %v370 = vadd.f32 0.0, %v369
  %v371 = vpop.f32.mrb[0].mxu0
  %v372 = vpop.f32.mrb[0].mxu0
  %v373 = vadd.f32 0.0, %v372
  %v374 = vpop.f32.mrb[0].mxu0
  %375 = vmatprep.mubr.bf16.mxu0 0
  %376 = vmatmul.mubr.bf16.gmra.mrb[0].mxu0 %v296
  %v377 = vpop.f32.mrb[0].mxu0
  %v378 = vadd.f32 0.0, %v377
  %v379 = vpop.f32.mrb[0].mxu0
  %v380 = vpop.f32.mrb[0].mxu0
  %v381 = vadd.f32 0.0, %v380
  %v382 = vpop.f32.mrb[0].mxu0
  %383 = vmatprep.mubr.bf16.mxu0 0
  %384 = vmatmul.mubr.bf16.gmra.mrb[0].mxu0 %v299
  %v385 = vpop.f32.mrb[0].mxu0
  %v386 = vadd.f32 0.0, %v385
  %v387 = vpop.f32.mrb[0].mxu0
  %v388 = vpop.f32.mrb[0].mxu0
  %v389 = vadd.f32 0.0, %v388
  %v390 = vpop.f32.mrb[0].mxu0
  %391 = vmatprep.mubr.bf16.mxu0 0
  %392 = vmatmul.mubr.bf16.gmra.mrb[0].mxu0 %v302
  %v393 = vpop.f32.mrb[0].mxu0
  %v394 = vadd.f32 0.0, %v393
  %v395 = vpop.f32.mrb[0].mxu0
  %v396 = vpop.f32.mrb[0].mxu0
  %v397 = vadd.f32 0.0, %v396
  %v398 = vpop.f32.mrb[0].mxu0
  %399 = vdwg.mxu0
  %v400 = vmul.f32 %v346, %v212
  %v401 = vmul.f32 %v349, %v213
  %v402 = vmul.f32 %v354, %v214
  %v403 = vmul.f32 %v357, %v215
  %v404 = vmul.f32 %v362, %v216
  %v405 = vmul.f32 %v365, %v217
  %v406 = vmul.f32 %v370, %v218
  %v407 = vmul.f32 %v373, %v219
  %v408 = vmul.f32 %v378, %v220
  %v409 = vmul.f32 %v381, %v221
  %v410 = vmul.f32 %v386, %v222
  %v411 = vmul.f32 %v389, %v223
  %v412 = vmul.f32 %v394, %v224
  %v413 = vmul.f32 %v397, %v225
  %v414 = vpack.c.bf16 %v401, %v400
  %v415 = vpack.c.bf16 %v403, %v402
  %v416 = vpack.c.bf16 %v405, %v404
  %v417 = vpack.c.bf16 %v407, %v406
  %v418 = vpack.c.bf16 %v409, %v408
  %v419 = vpack.c.bf16 %v411, %v410
  %v420 = vpack.c.bf16 %v413, %v412
  %v428 = vunpack.c.l.b16 %v414
  %v429 = vunpack.c.h.b16 %v414
  %v430 = vunpack.c.l.b16 %v415
  %v431 = vunpack.c.h.b16 %v415
  %v432 = vunpack.c.l.b16 %v416
  %v433 = vunpack.c.h.b16 %v416
  %v434 = vunpack.c.l.b16 %v417
  %v435 = vunpack.c.h.b16 %v417
  %v436 = vunpack.c.l.b16 %v418
  %v437 = vunpack.c.h.b16 %v418
  %v438 = vunpack.c.l.b16 %v419
  %v439 = vunpack.c.h.b16 %v419
  %v440 = vunpack.c.l.b16 %v420
  %v441 = vunpack.c.h.b16 %v420
  %v442 = vpack.c.b16 %v428, %v428
  %v443 = vpack.c.b16 %v429, %v429
  %v444 = vpack.c.b16 %v430, %v430
  %v445 = vpack.c.b16 %v431, %v431
  %v446 = vpack.c.b16 %v432, %v432
  %v447 = vpack.c.b16 %v433, %v433
  %v448 = vpack.c.b16 %v434, %v434
  %v449 = vpack.c.b16 %v435, %v435
  %v450 = vpack.c.b16 %v436, %v436
  %v451 = vpack.c.b16 %v437, %v437
  %v452 = vpack.c.b16 %v438, %v438
  %v453 = vpack.c.b16 %v439, %v439
  %v454 = vpack.c.b16 %v440, %v440
  %v455 = vpack.c.b16 %v441, %v441
  %vm470 = vcmask 257024
  %471 = vst.msk [vmem:[%s5] sm:$0xf] %vm470, %v442
  %472 = vst.msk [vmem:[%s5 + $0x4] sm:$0xf] %vm470, %v443
  %473 = vst.msk [vmem:[%s5 + $0x8] sm:$0xf] %vm470, %v444
  %474 = vst.msk [vmem:[%s5 + $0xc] sm:$0xf] %vm470, %v445
  %475 = vst.msk [vmem:[%s5 + $0x10] sm:$0xf] %vm470, %v446
  %476 = vst.msk [vmem:[%s5 + $0x14] sm:$0xf] %vm470, %v447
  %477 = vst.msk [vmem:[%s5 + $0x18] sm:$0xf] %vm470, %v448
  %478 = vst.msk [vmem:[%s5 + $0x1c] sm:$0xf] %vm470, %v449
  %479 = vst.msk [vmem:[%s5 + $0x20] sm:$0xf] %vm470, %v450
  %480 = vst.msk [vmem:[%s5 + $0x24] sm:$0xf] %vm470, %v451
  %481 = vst.msk [vmem:[%s5 + $0x28] sm:$0xf] %vm470, %v452
  %482 = vst.msk [vmem:[%s5 + $0x2c] sm:$0xf] %vm470, %v453
  %483 = vst.msk [vmem:[%s5 + $0x30] sm:$0xf] %vm470, %v454
  %484 = vst.msk [vmem:[%s5 + $0x34] sm:$0xf] %vm470, %v455
  // Predicated region
  $region22: #{encoder_mesh_block_forward.13} parent=0 // pred_check
    _
  $region23: #{encoder_mesh_block_forward.13} parent=0 // pred_check_branch
    %486 = sbr.rel (0) target = $region25
  $region24: #{encoder_mesh_block_forward.13} parent=0 // pred_region
    _
  $region25: #{encoder_mesh_block_forward.13} parent=0 // pred_fallthru
    _
  // Predicated region
  $region26: #{encoder_mesh_block_forward.13} parent=0 // pred_check
    _
  $region27: #{encoder_mesh_block_forward.13} parent=0 // pred_check_branch
    %488 = sbr.rel (0) target = $region29
  $region28: #{encoder_mesh_block_forward.13} parent=0 // pred_region
    _
  $region29: #{encoder_mesh_block_forward.13} parent=0 // pred_fallthru
    _

// kernel: encoder_mesh_block_forward.17
$region0: #{encoder_mesh_block_forward.17}
  #allocation0 [shape = 'u32[]', space=smem, size = 0x4, offset = 0x4, fixed_abs, tag = 'smem constant byte address 0x4 - core index']
  #allocation1 [shape = 'u32[144,128]{1,0:T(1,128)}', space=vmem, size = 0x12000, scoped, tag = 'internal scratch']
  %s0 = inlined_call_operand.vmem [shape: bf16[64,24], index: 0, kind: input, shape index: {}]
  %s1 = inlined_call_operand.vmem [shape: bf16[24,32], index: 1, kind: input, shape index: {}]
  %s2 = inlined_call_operand.vmem [shape: f32[1,32], index: 2, kind: input, shape index: {}]
  %s3 = inlined_call_operand.vmem [shape: bf16[64,32], index: 3, kind: output, shape index: {}]
  %s4 = sld [smem:[#allocation0]]
  $region22: #{encoder_mesh_block_forward.17} parent=0
    _
  %s6 = ssub.s32 1, %s4
  %s7 = scalar_select 0, %s6, %s4
  // Predicated region
  $region2: #{encoder_mesh_block_forward.17} parent=0 // pred_check
    _
  $region3: #{encoder_mesh_block_forward.17} parent=0 // pred_check_branch
    %9 = sbr.rel (0) target = $region5
  $region4: #{encoder_mesh_block_forward.17} parent=0 // pred_region
    _
  $region5: #{encoder_mesh_block_forward.17} parent=0 // pred_fallthru
    _
  // Predicated region
  $region6: #{encoder_mesh_block_forward.17} parent=0 // pred_check
    _
  $region7: #{encoder_mesh_block_forward.17} parent=0 // pred_check_branch
    %11 = sbr.rel (0) target = $region9
  $region8: #{encoder_mesh_block_forward.17} parent=0 // pred_region
    _
  $region9: #{encoder_mesh_block_forward.17} parent=0 // pred_fallthru
    _
  // Predicated region
  $region10: #{encoder_mesh_block_forward.17} parent=0 // pred_check
    _
  $region11: #{encoder_mesh_block_forward.17} parent=0 // pred_check_branch
    %13 = sbr.rel (0) target = $region13
  $region12: #{encoder_mesh_block_forward.17} parent=0 // pred_region
    _
  $region13: #{encoder_mesh_block_forward.17} parent=0 // pred_fallthru
    _
  %v15 = vld [vmem:[%s0] sm:$0xf]
  %v16 = vld [vmem:[%s0 + $0x4] sm:$0xf]
  %v17 = vld [vmem:[%s0 + $0x8] sm:$0xf]
  %v18 = vld [vmem:[%s0 + $0xc] sm:$0xf]
  %v19 = vld [vmem:[%s0 + $0x10] sm:$0xf]
  %v20 = vld [vmem:[%s0 + $0x14] sm:$0xf]
  %v21 = vld [vmem:[%s0 + $0x18] sm:$0xf]
  %v22 = vld [vmem:[%s0 + $0x1c] sm:$0xf]
  %v23 = vld [vmem:[%s1] sm:$0xf]
  %v24 = vld [vmem:[%s1 + $0x4] sm:$0xf]
  %v25 = vld [vmem:[%s1 + $0x8] sm:$0xf]
  %v26 = vld [vmem:[%s2] sm:$0x1]
  %v28 = vlaneseq
  %v29 = vshrl.u32 %v28, 7
  %v30 = vsub.s32 0, %v29
  %v31 = vrot.slane %v26, %v30
  %v41 = vunpack.c.l.b16 %v15
  %v42 = vunpack.c.l.b16 %v16
  %v43 = vunpack.c.l.b16 %v17
  %v44 = vunpack.c.l.b16 %v18
  %v45 = vunpack.c.l.b16 %v19
  %v46 = vunpack.c.l.b16 %v20
  %v47 = vunpack.c.l.b16 %v21
  %v48 = vunpack.c.l.b16 %v22
  %v49 = vpack.c.b16 %v42, %v41
  %v50 = vpack.c.b16 %v44, %v43
  %v51 = vpack.c.b16 %v46, %v45
  %v52 = vpack.c.b16 %v48, %v47
  %v56 = vunpack.c.l.b16 %v23
  %v57 = vunpack.c.l.b16 %v24
  %v58 = vunpack.c.l.b16 %v25
  %v59 = vpack.c.b16 %v57, %v56
  %v60 = vpack.c.b16 %v58, %v58
  %vm62 = vcmask 195584
  %v64 = vsel %vm62, %v49, 0
  %v67 = vsel %vm62, %v50, 0
  %v70 = vsel %vm62, %v51, 0
  %v73 = vsel %vm62, %v52, 0
  %vm75 = vcmask 1043456
  %v77 = vsel %vm75, %v60, 0
  %79 = vmatprep.subr.bf16.mxu0 0
  %80 = vmatpush1.bf16.msra.mxu0 %v59
  %81 = vmatprep.subr.bf16.mxu0 0
  %82 = vmatpush1.bf16.msra.mxu0 %v77
  %83 = vmatprep.subr.bf16.mxu0 0
  %84 = vmatpush1.bf16.msra.mxu0 0
  %85 = vmatprep.subr.bf16.mxu0 0
  %86 = vmatpush1.bf16.msra.mxu0 0
  %87 = vmatprep.subr.bf16.mxu0 0
  %88 = vmatpush1.bf16.msra.mxu0 0
  %89 = vmatprep.subr.bf16.mxu0 0
  %90 = vmatpush1.bf16.msra.mxu0 0
  %91 = vmatprep.subr.bf16.mxu0 0
  %92 = vmatpush1.bf16.msra.mxu0 0
  %93 = vmatprep.subr.bf16.mxu0 0
  %94 = vmatpush1.bf16.msra.mxu0 0
  %95 = vmatprep.subr.bf16.mxu0 0
  %96 = vmatpush1.bf16.msra.mxu0 0
  %97 = vmatprep.subr.bf16.mxu0 0
  %98 = vmatpush1.bf16.msra.mxu0 0
  %99 = vmatprep.subr.bf16.mxu0 0
  %100 = vmatpush1.bf16.msra.mxu0 0
  %101 = vmatprep.subr.bf16.mxu0 0
  %102 = vmatpush1.bf16.msra.mxu0 0
  %103 = vmatprep.subr.bf16.mxu0 0
  %104 = vmatpush1.bf16.msra.mxu0 0
  %105 = vmatprep.subr.bf16.mxu0 0
  %106 = vmatpush1.bf16.msra.mxu0 0
  %107 = vmatprep.subr.bf16.mxu0 0
  %108 = vmatpush1.bf16.msra.mxu0 0
  %109 = vmatprep.subr.bf16.mxu0 0
  %110 = vmatpush1.bf16.msra.mxu0 0
  %111 = vmatprep.mubr.bf16.mxu0 0
  %112 = vmatmul.mubr.bf16.gmra.mrb[0].mxu0 %v64
  %v113 = vpop.f32.mrb[0].mxu0
  %v114 = vadd.f32 %v31, %v113
  %v115 = vpop.f32.mrb[0].mxu0
  %v116 = vpop.f32.mrb[0].mxu0
  %v117 = vadd.f32 %v31, %v116
  %v118 = vpop.f32.mrb[0].mxu0
  %119 = vmatprep.mubr.bf16.mxu0 0
  %120 = vmatmul.mubr.bf16.gmra.mrb[0].mxu0 %v67
  %v121 = vpop.f32.mrb[0].mxu0
  %v122 = vadd.f32 %v31, %v121
  %v123 = vpop.f32.mrb[0].mxu0
  %v124 = vpop.f32.mrb[0].mxu0
  %v125 = vadd.f32 %v31, %v124
  %v126 = vpop.f32.mrb[0].mxu0
  %127 = vmatprep.mubr.bf16.mxu0 0
  %128 = vmatmul.mubr.bf16.gmra.mrb[0].mxu0 %v70
  %v129 = vpop.f32.mrb[0].mxu0
  %v130 = vadd.f32 %v31, %v129
  %v131 = vpop.f32.mrb[0].mxu0
  %v132 = vpop.f32.mrb[0].mxu0
  %v133 = vadd.f32 %v31, %v132
  %v134 = vpop.f32.mrb[0].mxu0
  %135 = vmatprep.mubr.bf16.mxu0 0
  %136 = vmatmul.mubr.bf16.gmra.mrb[0].mxu0 %v73
  %v137 = vpop.f32.mrb[0].mxu0
  %v138 = vadd.f32 %v31, %v137
  %v139 = vpop.f32.mrb[0].mxu0
  %v140 = vpop.f32.mrb[0].mxu0
  %v141 = vadd.f32 %v31, %v140
  %v142 = vpop.f32.mrb[0].mxu0
  %143 = vdwg.mxu0
  %v144 = vmax.f32 %v114, 0.0
  %v145 = vmax.f32 %v117, 0.0
  %v146 = vmax.f32 %v122, 0.0
  %v147 = vmax.f32 %v125, 0.0
  %v148 = vmax.f32 %v130, 0.0
  %v149 = vmax.f32 %v133, 0.0
  %v150 = vmax.f32 %v138, 0.0
  %v151 = vmax.f32 %v141, 0.0
  %v152 = vpack.c.bf16 %v145, %v144
  %v153 = vpack.c.bf16 %v147, %v146
  %v154 = vpack.c.bf16 %v149, %v148
  %v155 = vpack.c.bf16 %v151, %v150
  %v160 = vunpack.c.l.b16 %v152
  %v161 = vunpack.c.h.b16 %v152
  %v162 = vunpack.c.l.b16 %v153
  %v163 = vunpack.c.h.b16 %v153
  %v164 = vunpack.c.l.b16 %v154
  %v165 = vunpack.c.h.b16 %v154
  %v166 = vunpack.c.l.b16 %v155
  %v167 = vunpack.c.h.b16 %v155
  %v168 = vpack.c.b16 %v160, %v160
  %v169 = vpack.c.b16 %v161, %v161
  %v170 = vpack.c.b16 %v162, %v162
  %v171 = vpack.c.b16 %v163, %v163
  %v172 = vpack.c.b16 %v164, %v164
  %v173 = vpack.c.b16 %v165, %v165
  %v174 = vpack.c.b16 %v166, %v166
  %v175 = vpack.c.b16 %v167, %v167
  %vm184 = vcmask 257024
  %185 = vst.msk [vmem:[%s3] sm:$0xf] %vm184, %v168
  %186 = vst.msk [vmem:[%s3 + $0x4] sm:$0xf] %vm184, %v169
  %187 = vst.msk [vmem:[%s3 + $0x8] sm:$0xf] %vm184, %v170
  %188 = vst.msk [vmem:[%s3 + $0xc] sm:$0xf] %vm184, %v171
  %189 = vst.msk [vmem:[%s3 + $0x10] sm:$0xf] %vm184, %v172
  %190 = vst.msk [vmem:[%s3 + $0x14] sm:$0xf] %vm184, %v173
  %191 = vst.msk [vmem:[%s3 + $0x18] sm:$0xf] %vm184, %v174
  %192 = vst.msk [vmem:[%s3 + $0x1c] sm:$0xf] %vm184, %v175
  // Predicated region
  $region14: #{encoder_mesh_block_forward.17} parent=0 // pred_check
    _
  $region15: #{encoder_mesh_block_forward.17} parent=0 // pred_check_branch
    %194 = sbr.rel (0) target = $region17
  $region16: #{encoder_mesh_block_forward.17} parent=0 // pred_region
    _
  $region17: #{encoder_mesh_block_forward.17} parent=0 // pred_fallthru
    _
  // Predicated region
  $region18: #{encoder_mesh_block_forward.17} parent=0 // pred_check
    _
  $region19: #{encoder_mesh_block_forward.17} parent=0 // pred_check_branch
    %196 = sbr.rel (0) target = $region21
  $region20: #{encoder_mesh_block_forward.17} parent=0 // pred_region
    _
  $region21: #{encoder_mesh_block_forward.17} parent=0 // pred_fallthru
    _

// kernel: encoder_mesh_block_forward.16
$region0: #{encoder_mesh_block_forward.16}
  #allocation0 [shape = 'u32[]', space=smem, size = 0x4, offset = 0x4, fixed_abs, tag = 'smem constant byte address 0x4 - core index']
  #allocation1 [shape = 'u32[144,128]{1,0:T(1,128)}', space=vmem, size = 0x12000, scoped, tag = 'internal scratch']
  %s0 = inlined_call_operand.vmem [shape: bf16[64,16], index: 0, kind: input, shape index: {}]
  %s1 = inlined_call_operand.vmem [shape: bf16[64,32], index: 1, kind: input, shape index: {}]
  %s2 = inlined_call_operand.vmem [shape: f32[64,1], index: 2, kind: input, shape index: {}]
  %s3 = inlined_call_operand.vmem [shape: bf16[32,8], index: 3, kind: input, shape index: {}]
  %s4 = inlined_call_operand.vmem [shape: f32[1,8], index: 4, kind: input, shape index: {}]
  %s5 = inlined_call_operand.vmem [shape: bf16[64,24], index: 5, kind: output, shape index: {}]
  %s6 = sld [smem:[#allocation0]]
  $region30: #{encoder_mesh_block_forward.16} parent=0
    _
  %s8 = ssub.s32 1, %s6
  %s9 = scalar_select 0, %s8, %s6
  // Predicated region
  $region2: #{encoder_mesh_block_forward.16} parent=0 // pred_check
    _
  $region3: #{encoder_mesh_block_forward.16} parent=0 // pred_check_branch
    %11 = sbr.rel (0) target = $region5
  $region4: #{encoder_mesh_block_forward.16} parent=0 // pred_region
    _
  $region5: #{encoder_mesh_block_forward.16} parent=0 // pred_fallthru
    _
  // Predicated region
  $region6: #{encoder_mesh_block_forward.16} parent=0 // pred_check
    _
  $region7: #{encoder_mesh_block_forward.16} parent=0 // pred_check_branch
    %13 = sbr.rel (0) target = $region9
  $region8: #{encoder_mesh_block_forward.16} parent=0 // pred_region
    _
  $region9: #{encoder_mesh_block_forward.16} parent=0 // pred_fallthru
    _
  // Predicated region
  $region10: #{encoder_mesh_block_forward.16} parent=0 // pred_check
    _
  $region11: #{encoder_mesh_block_forward.16} parent=0 // pred_check_branch
    %15 = sbr.rel (0) target = $region13
  $region12: #{encoder_mesh_block_forward.16} parent=0 // pred_region
    _
  $region13: #{encoder_mesh_block_forward.16} parent=0 // pred_fallthru
    _
  // Predicated region
  $region14: #{encoder_mesh_block_forward.16} parent=0 // pred_check
    _
  $region15: #{encoder_mesh_block_forward.16} parent=0 // pred_check_branch
    %17 = sbr.rel (0) target = $region17
  $region16: #{encoder_mesh_block_forward.16} parent=0 // pred_region
    _
  $region17: #{encoder_mesh_block_forward.16} parent=0 // pred_fallthru
    _
  // Predicated region
  $region18: #{encoder_mesh_block_forward.16} parent=0 // pred_check
    _
  $region19: #{encoder_mesh_block_forward.16} parent=0 // pred_check_branch
    %19 = sbr.rel (0) target = $region21
  $region20: #{encoder_mesh_block_forward.16} parent=0 // pred_region
    _
  $region21: #{encoder_mesh_block_forward.16} parent=0 // pred_fallthru
    _
  %v21 = vld [vmem:[%s1] sm:$0xf]
  %v22 = vld [vmem:[%s1 + $0x4] sm:$0xf]
  %v23 = vld [vmem:[%s1 + $0x8] sm:$0xf]
  %v24 = vld [vmem:[%s1 + $0xc] sm:$0xf]
  %v25 = vld [vmem:[%s1 + $0x10] sm:$0xf]
  %v26 = vld [vmem:[%s1 + $0x14] sm:$0xf]
  %v27 = vld [vmem:[%s1 + $0x18] sm:$0xf]
  %v28 = vld [vmem:[%s1 + $0x1c] sm:$0xf]
  %v29 = vld [vmem:[%s3] sm:$0xf]
  %v30 = vld [vmem:[%s3 + $0x4] sm:$0xf]
  %v31 = vld [vmem:[%s3 + $0x8] sm:$0xf]
  %v32 = vld [vmem:[%s3 + $0xc] sm:$0xf]
  %v41 = vunpack.c.l.b16 %v21
  %v42 = vunpack.c.l.b16 %v22
  %v43 = vunpack.c.l.b16 %v23
  %v44 = vunpack.c.l.b16 %v24
  %v45 = vunpack.c.l.b16 %v25
  %v46 = vunpack.c.l.b16 %v26
  %v47 = vunpack.c.l.b16 %v27
  %v48 = vunpack.c.l.b16 %v28
  %v49 = vpack.c.b16 %v42, %v41
  %v50 = vpack.c.b16 %v44, %v43
  %v51 = vpack.c.b16 %v46, %v45
  %v52 = vpack.c.b16 %v48, %v47
  %v57 = vunpack.c.l.b16 %v29
  %v58 = vunpack.c.l.b16 %v30
  %v59 = vunpack.c.l.b16 %v31
  %v60 = vunpack.c.l.b16 %v32
  %v61 = vpack.c.b16 %v58, %v57
  %v62 = vpack.c.b16 %v60, %v59
  %vm65 = vcmask 261120
  %v67 = vsel %vm65, %v49, 0
  %v70 = vsel %vm65, %v50, 0
  %v73 = vsel %vm65, %v51, 0
  %v76 = vsel %vm65, %v52, 0
  %78 = vmatprep.subr.bf16.mxu0 0
  %79 = vmatpush1.bf16.msra.mxu0 %v61
  %80 = vmatprep.subr.bf16.mxu0 0
  %81 = vmatpush1.bf16.msra.mxu0 %v62
  %82 = vmatprep.subr.bf16.mxu0 0
  %83 = vmatpush1.bf16.msra.mxu0 0
  %84 = vmatprep.subr.bf16.mxu0 0
  %85 = vmatpush1.bf16.msra.mxu0 0
  %86 = vmatprep.subr.bf16.mxu0 0
  %87 = vmatpush1.bf16.msra.mxu0 0
  %88 = vmatprep.subr.bf16.mxu0 0
  %89 = vmatpush1.bf16.msra.mxu0 0
  %90 = vmatprep.subr.bf16.mxu0 0
  %91 = vmatpush1.bf16.msra.mxu0 0
  %92 = vmatprep.subr.bf16.mxu0 0
  %93 = vmatpush1.bf16.msra.mxu0 0
  %94 = vmatprep.subr.bf16.mxu0 0
  %95 = vmatpush1.bf16.msra.mxu0 0
  %96 = vmatprep.subr.bf16.mxu0 0
  %97 = vmatpush1.bf16.msra.mxu0 0
  %98 = vmatprep.subr.bf16.mxu0 0
  %99 = vmatpush1.bf16.msra.mxu0 0
  %100 = vmatprep.subr.bf16.mxu0 0
  %101 = vmatpush1.bf16.msra.mxu0 0
  %102 = vmatprep.subr.bf16.mxu0 0
  %103 = vmatpush1.bf16.msra.mxu0 0
  %104 = vmatprep.subr.bf16.mxu0 0
  %105 = vmatpush1.bf16.msra.mxu0 0
  %106 = vmatprep.subr.bf16.mxu0 0
  %107 = vmatpush1.bf16.msra.mxu0 0
  %108 = vmatprep.subr.bf16.mxu0 0
  %109 = vmatpush1.bf16.msra.mxu0 0
  %110 = vmatprep.mubr.bf16.mxu0 0
  %111 = vmatmul.mubr.bf16.gmra.mrb[0].mxu0 %v67
  %v112 = vpop.f32.mrb[0].mxu0
  %v113 = vadd.f32 0.0, %v112
  %v114 = vpop.f32.mrb[0].mxu0
  %v115 = vpop.f32.mrb[0].mxu0
  %v116 = vadd.f32 0.0, %v115
  %v117 = vpop.f32.mrb[0].mxu0
  %118 = vmatprep.mubr.bf16.mxu0 0
  %119 = vmatmul.mubr.bf16.gmra.mrb[0].mxu0 %v70
  %v120 = vpop.f32.mrb[0].mxu0
  %v121 = vadd.f32 0.0, %v120
  %v122 = vpop.f32.mrb[0].mxu0
  %v123 = vpop.f32.mrb[0].mxu0
  %v124 = vadd.f32 0.0, %v123
  %v125 = vpop.f32.mrb[0].mxu0
  %126 = vmatprep.mubr.bf16.mxu0 0
  %127 = vmatmul.mubr.bf16.gmra.mrb[0].mxu0 %v73
  %v128 = vpop.f32.mrb[0].mxu0
  %v129 = vadd.f32 0.0, %v128
  %v130 = vpop.f32.mrb[0].mxu0
  %v131 = vpop.f32.mrb[0].mxu0
  %v132 = vadd.f32 0.0, %v131
  %v133 = vpop.f32.mrb[0].mxu0
  %134 = vmatprep.mubr.bf16.mxu0 0
  %135 = vmatmul.mubr.bf16.gmra.mrb[0].mxu0 %v76
  %v136 = vpop.f32.mrb[0].mxu0
  %v137 = vadd.f32 0.0, %v136
  %v138 = vpop.f32.mrb[0].mxu0
  %v139 = vpop.f32.mrb[0].mxu0
  %v140 = vadd.f32 0.0, %v139
  %v141 = vpop.f32.mrb[0].mxu0
  %142 = vdwg.mxu0
  %v143 = vld [vmem:[%s2] sm:$0xff]
  %v144 = vld [vmem:[%s2 + $0x8] sm:$0xff]
  %v145 = vld [vmem:[%s2 + $0x10] sm:$0xff]
  %v146 = vld [vmem:[%s2 + $0x18] sm:$0xff]
  %v147 = vld [vmem:[%s2 + $0x20] sm:$0xff]
  %v148 = vld [vmem:[%s2 + $0x28] sm:$0xff]
  %v149 = vld [vmem:[%s2 + $0x30] sm:$0xff]
  %v150 = vld [vmem:[%s2 + $0x38] sm:$0xff]
  %152 = vset.pattern.permute.xlu0 0
  %153 = vperm.xlu0 %152, %v143
  %v154 = vpop.permute.xlu0 %153
  %157 = vset.pattern.permute.xlu0 0
  %158 = vperm.xlu0 %157, %v144
  %v159 = vpop.permute.xlu0 %158
  %162 = vset.pattern.permute.xlu0 0
  %163 = vperm.xlu0 %162, %v145
  %v164 = vpop.permute.xlu0 %163
  %167 = vset.pattern.permute.xlu0 0
  %168 = vperm.xlu0 %167, %v146
  %v169 = vpop.permute.xlu0 %168
  %172 = vset.pattern.permute.xlu0 0
  %173 = vperm.xlu0 %172, %v147
  %v174 = vpop.permute.xlu0 %173
  %177 = vset.pattern.permute.xlu0 0
  %178 = vperm.xlu0 %177, %v148
  %v179 = vpop.permute.xlu0 %178
  %182 = vset.pattern.permute.xlu0 0
  %183 = vperm.xlu0 %182, %v149
  %v184 = vpop.permute.xlu0 %183
  %187 = vset.pattern.permute.xlu0 0
  %188 = vperm.xlu0 %187, %v150
  %v189 = vpop.permute.xlu0 %188
  %v191 = vmul.f32 %v113, %v154
  %v192 = vmul.f32 %v116, %v159
  %v193 = vmul.f32 %v121, %v164
  %v194 = vmul.f32 %v124, %v169
  %v195 = vmul.f32 %v129, %v174
  %v196 = vmul.f32 %v132, %v179
  %v197 = vmul.f32 %v137, %v184
  %v198 = vmul.f32 %v140, %v189
  %v199 = vld [vmem:[%s4] sm:$0x1]
  %v201 = vlaneseq
  %v202 = vshrl.u32 %v201, 7
  %v203 = vsub.s32 0, %v202
  %v204 = vrot.slane %v199, %v203
  %v206 = vadd.f32 %v191, %v204
  %v207 = vadd.f32 %v192, %v204
  %v208 = vadd.f32 %v193, %v204
  %v209 = vadd.f32 %v194, %v204
  %v210 = vadd.f32 %v195, %v204
  %v211 = vadd.f32 %v196, %v204
  %v212 = vadd.f32 %v197, %v204
  %v213 = vadd.f32 %v198, %v204
  %v214 = vmax.f32 %v206, 0.0
  %v215 = vmax.f32 %v207, 0.0
  %v216 = vmax.f32 %v208, 0.0
  %v217 = vmax.f32 %v209, 0.0
  %v218 = vmax.f32 %v210, 0.0
  %v219 = vmax.f32 %v211, 0.0
  %v220 = vmax.f32 %v212, 0.0
  %v221 = vmax.f32 %v213, 0.0
  %v222 = vld [vmem:[%s0] sm:$0xf]
  %v223 = vld [vmem:[%s0 + $0x4] sm:$0xf]
  %v224 = vld [vmem:[%s0 + $0x8] sm:$0xf]
  %v225 = vld [vmem:[%s0 + $0xc] sm:$0xf]
  %v226 = vld [vmem:[%s0 + $0x10] sm:$0xf]
  %v227 = vld [vmem:[%s0 + $0x14] sm:$0xf]
  %v228 = vld [vmem:[%s0 + $0x18] sm:$0xf]
  %v229 = vld [vmem:[%s0 + $0x1c] sm:$0xf]
  %vm230 = vcmask 125952
  %231 = vst.msk [vmem:[%s5] sm:$0xf] %vm230, %v222
  %232 = vst.msk [vmem:[%s5 + $0x4] sm:$0xf] %vm230, %v223
  %233 = vst.msk [vmem:[%s5 + $0x8] sm:$0xf] %vm230, %v224
  %234 = vst.msk [vmem:[%s5 + $0xc] sm:$0xf] %vm230, %v225
  %235 = vst.msk [vmem:[%s5 + $0x10] sm:$0xf] %vm230, %v226
  %236 = vst.msk [vmem:[%s5 + $0x14] sm:$0xf] %vm230, %v227
  %237 = vst.msk [vmem:[%s5 + $0x18] sm:$0xf] %vm230, %v228
  %238 = vst.msk [vmem:[%s5 + $0x1c] sm:$0xf] %vm230, %v229
  %v239 = vpack.c.bf16 %v215, %v214
  %v240 = vpack.c.bf16 %v217, %v216
  %v241 = vpack.c.bf16 %v219, %v218
  %v242 = vpack.c.bf16 %v221, %v220
  %v247 = vunpack.c.l.b16 %v239
  %v248 = vunpack.c.h.b16 %v239
  %v249 = vunpack.c.l.b16 %v240
  %v250 = vunpack.c.h.b16 %v240
  %v251 = vunpack.c.l.b16 %v241
  %v252 = vunpack.c.h.b16 %v241
  %v253 = vunpack.c.l.b16 %v242
  %v254 = vunpack.c.h.b16 %v242
  %v255 = vpack.c.b16 %v247, %v247
  %v256 = vpack.c.b16 %v248, %v248
  %v257 = vpack.c.b16 %v249, %v249
  %v258 = vpack.c.b16 %v250, %v250
  %v259 = vpack.c.b16 %v251, %v251
  %v260 = vpack.c.b16 %v252, %v252
  %v261 = vpack.c.b16 %v253, %v253
  %v262 = vpack.c.b16 %v254, %v254
  %263 = vrot.lane.b32.xlu0 %v255, 16
  %v264 = vpop.permute.xlu0 %263
  %265 = vrot.lane.b32.xlu0 %v256, 16
  %v266 = vpop.permute.xlu0 %265
  %267 = vrot.lane.b32.xlu0 %v257, 16
  %v268 = vpop.permute.xlu0 %267
  %269 = vrot.lane.b32.xlu0 %v258, 16
  %v270 = vpop.permute.xlu0 %269
  %271 = vrot.lane.b32.xlu0 %v259, 16
  %v272 = vpop.permute.xlu0 %271
  %273 = vrot.lane.b32.xlu0 %v260, 16
  %v274 = vpop.permute.xlu0 %273
  %275 = vrot.lane.b32.xlu0 %v261, 16
  %v276 = vpop.permute.xlu0 %275
  %277 = vrot.lane.b32.xlu0 %v262, 16
  %v278 = vpop.permute.xlu0 %277
  %vm287 = vcmask 191616
  %288 = vst.msk [vmem:[%s5] sm:$0xf] %vm287, %v264
  %289 = vst.msk [vmem:[%s5 + $0x4] sm:$0xf] %vm287, %v266
  %290 = vst.msk [vmem:[%s5 + $0x8] sm:$0xf] %vm287, %v268
  %291 = vst.msk [vmem:[%s5 + $0xc] sm:$0xf] %vm287, %v270
  %292 = vst.msk [vmem:[%s5 + $0x10] sm:$0xf] %vm287, %v272
  %293 = vst.msk [vmem:[%s5 + $0x14] sm:$0xf] %vm287, %v274
  %294 = vst.msk [vmem:[%s5 + $0x18] sm:$0xf] %vm287, %v276
  %295 = vst.msk [vmem:[%s5 + $0x1c] sm:$0xf] %vm287, %v278
  // Predicated region
  $region22: #{encoder_mesh_block_forward.16} parent=0 // pred_check
    _
  $region23: #{encoder_mesh_block_forward.16} parent=0 // pred_check_branch
    %297 = sbr.rel (0) target = $region25
  $region24: #{encoder_mesh_block_forward.16} parent=0 // pred_region
    _
  $region25: #{encoder_mesh_block_forward.16} parent=0 // pred_fallthru
    _
  // Predicated region
  $region26: #{encoder_mesh_block_forward.16} parent=0 // pred_check
    _
  $region27: #{encoder_mesh_block_forward.16} parent=0 // pred_check_branch
    %299 = sbr.rel (0) target = $region29
  $region28: #{encoder_mesh_block_forward.16} parent=0 // pred_region
    _
  $region29: #{encoder_mesh_block_forward.16} parent=0 // pred_fallthru
    _

</llo_original>
